<compile_context>
chip_gen: v6e
topology: v6e:2x2x1
jax: 0.10.0
libtpu: 0.0.40
codegen_flags: <defaults>
</compile_context>

<pallas_src>
import math

import jax
import jax.numpy as jnp
from jax import lax
from jax.experimental import pallas as pl
from jax.experimental.pallas import tpu as pltpu


# ----------------------------------------------------------------------------
# Geometry: zero-padded, row-major flattened NCHW layout used by the kernel.
#
# The H x W image lives at rows [1, H+1), cols [1, W+1) of an (Hp, Wp)
# zero-padded grid, flattened row-major to length Lpad = Hp*Wp.
#   * Wp is rounded up so P = H*Wp is a multiple of 128 (lane-dense outputs;
#     H=W=16 -> Wp=24, P=384).
#   * Hp = H + 3 (1 top + 2 bottom zero rows) keeps every shifted tap read
#     p + kh*Wp + kw (p < P, kh,kw in [0,3)) in bounds.
# Output columns [W, Wp) of each row are junk (computed, masked before reuse,
# discarded at extraction).
# ----------------------------------------------------------------------------
def _padded_geom(H, W):
    step = 128 // math.gcd(128, H)
    Wp = ((W + 2 + step - 1) // step) * step
    Hp = H + 3
    P = H * Wp
    Lpad = Hp * Wp
    return Hp, Wp, P, Lpad


def _tap_matrix(w_hwio):
    # HWIO (3,3,Cin,Cout) -> (Cout, 9*Cin); column index = (kh*3+kw)*Cin + cin,
    # matching the tap-stacked RHS row order built in-kernel.
    kh, kw, cin, cout = w_hwio.shape
    return jnp.transpose(w_hwio, (3, 0, 1, 2)).reshape(cout, kh * kw * cin)


def _vmem_limit_bytes():
    # Generation-aware VMEM budget (v7x: 64 MiB physical vs 128 MiB v5e/v6e).
    try:
        cap = int(pltpu.get_tpu_info().vmem_capacity_bytes)
        return min(cap // 2, 64 * 1024 * 1024)
    except Exception:
        return 32 * 1024 * 1024


# ----------------------------------------------------------------------------
# Fused whole-encoder kernel (one grid step == one batch element).
# ----------------------------------------------------------------------------
def _make_encoder_kernel(W, Wp, P, n_blocks):
    KH = KW = 3

    def kernel(*refs):
        n_in = 5 + 2 * n_blocks
        x_ref = refs[0]                                   # (Cin, Lpad)
        w1_ref, b1_ref, sc_ref, sh_ref = refs[1:5]
        blk_par = refs[5:n_in]                            # (w_i, b_i) pairs
        conv_ref, bn_ref, act_ref = refs[n_in:n_in + 3]   # (C1, P) each
        blk_out = refs[n_in + 3:n_in + 3 + n_blocks]      # (Ci, P) each
        rhs_ref, pad_a, pad_b = refs[n_in + 3 + n_blocks:]
        pads = (pad_a, pad_b)

        # Valid-column mask along the flattened spatial axis (junk cols >= W).
        col_ok = (lax.broadcasted_iota(jnp.int32, (1, P), 1) % Wp) < W

        def tap_stack(src_ref, cin):
            # Stage the 9 shifted tap slices into one contiguous (9*cin, P)
            # VMEM buffer -> the 3x3 conv becomes a single MXU contraction.
            for kh in range(KH):
                for kw in range(KW):
                    t = kh * KW + kw
                    d = kh * Wp + kw
                    rhs_ref[t * cin:(t + 1) * cin, :] = src_ref[:cin, d:d + P]
            return rhs_ref[:KH * KW * cin, :]

        def embed(dst_ref, val):
            # Re-embed a (C, P) activation into the zero-padded (C, Lpad)
            # layout for the next conv. Junk columns are zeroed first so they
            # cannot leak into the padding ring read by valid outputs.
            dst_ref[...] = jnp.zeros_like(dst_ref)
            dst_ref[:val.shape[0], Wp + 1:Wp + 1 + P] = jnp.where(col_ok, val, 0.0)

        # ---- stem: conv -> bn1 -> act1, one MXU pass + VPU epilogue --------
        cin0 = x_ref.shape[0]
        conv = jnp.dot(w1_ref[...], tap_stack(x_ref, cin0),
                       preferred_element_type=jnp.float32) + b1_ref[...]
        bnv = conv * sc_ref[...] + sh_ref[...]
        act = jnp.maximum(bnv, 0.0)
        conv_ref[...] = conv.astype(conv_ref.dtype)
        bn_ref[...] = bnv.astype(bn_ref.dtype)
        act_ref[...] = act.astype(act_ref.dtype)

        # ---- blocks: conv + bias + ReLU, intermediates stay in VMEM --------
        cur = act
        embed(pads[0], cur)
        for i in range(n_blocks):
            w_ref = blk_par[2 * i]
            b_ref = blk_par[2 * i + 1]
            rhs = tap_stack(pads[i % 2], cur.shape[0])
            cur = jnp.maximum(
                jnp.dot(w_ref[...], rhs, preferred_element_type=jnp.float32)
                + b_ref[...], 0.0)
            blk_out[i][...] = cur.astype(blk_out[i].dtype)
            if i + 1 < n_blocks:
                embed(pads[(i + 1) % 2], cur)

    return kernel


# ----------------------------------------------------------------------------
# Encoder forward (mirrors the PyTorch feature-collection loop), NCHW in/out.
# ----------------------------------------------------------------------------
def encoder_forward(x_nchw, params):
    N, Cin, H, W = x_nchw.shape
    C1 = params["conv_stem"]["w"].shape[-1]
    blocks = params["blocks"]
    n_blocks = len(blocks)
    assert n_blocks >= 1
    Hp, Wp, P, Lpad = _padded_geom(H, W)

    # Single input pad + flatten (the only wrapper-side layout op on the way in).
    xp = jnp.pad(x_nchw, ((0, 0), (0, 0), (1, Hp - H - 1), (1, Wp - W - 1)))
    xp = xp.reshape(N, Cin, Lpad)

    # Fold BN (eval mode) into per-channel scale/shift.
    bn = params["bn1"]
    inv_std = 1.0 / jnp.sqrt(bn["var"] + 1e-5)
    scale = (bn["gamma"] * inv_std).reshape(C1, 1)
    shift = (bn["beta"] - bn["mean"] * bn["gamma"] * inv_std).reshape(C1, 1)
    w_stem = _tap_matrix(params["conv_stem"]["w"])
    b_stem = params["conv_stem"]["b"].reshape(C1, 1)

    blk_ops, blk_cins, blk_couts = [], [], []
    for blk in blocks:
        cin_i, cout_i = blk["w"].shape[2], blk["w"].shape[3]
        blk_cins.append(cin_i)
        blk_couts.append(cout_i)
        blk_ops += [_tap_matrix(blk["w"]), blk["b"].reshape(cout_i, 1)]

    c_max = max([Cin] + blk_cins)
    dt = x_nchw.dtype

    out_shape = tuple(
        [jax.ShapeDtypeStruct((N, C1, P), dt)] * 3
        + [jax.ShapeDtypeStruct((N, c, P), dt) for c in blk_couts])

    def _const(arr):
        assert arr.ndim == 2
        return pl.BlockSpec(arr.shape, lambda n: (0, 0))

    def _per_batch(c):
        return pl.BlockSpec((None, c, P), lambda n: (n, 0, 0))

    in_specs = ([pl.BlockSpec((None, Cin, Lpad), lambda n: (n, 0, 0)),
                 _const(w_stem), _const(b_stem), _const(scale), _const(shift)]
                + [_const(a) for a in blk_ops])
    out_specs = [_per_batch(C1)] * 3 + [_per_batch(c) for c in blk_couts]

    grid_spec = pltpu.PrefetchScalarGridSpec(
        num_scalar_prefetch=0,
        grid=(N,),
        in_specs=in_specs,
        out_specs=out_specs,
        scratch_shapes=[
            pltpu.VMEM((9 * c_max, P), jnp.float32),   # tap-stacked RHS staging
            pltpu.VMEM((c_max, Lpad), jnp.float32),    # padded activation (ping)
            pltpu.VMEM((c_max, Lpad), jnp.float32),    # padded activation (pong)
        ])

    outs = pl.pallas_call(
        _make_encoder_kernel(W, Wp, P, n_blocks),
        grid_spec=grid_spec,
        out_shape=out_shape,
        compiler_params=pltpu.CompilerParams(
            dimension_semantics=("parallel",),          # batch -> 2nd TC on v7x
            vmem_limit_bytes=_vmem_limit_bytes()),
    )(xp, w_stem, b_stem, scale, shift, *blk_ops)

    # Lane-dense (N, C, P) -> NCHW (required by the Encoder feature contract).
    def extract(o):
        n, c, _ = o.shape
        return o.reshape(n, c, H, Wp)[:, :, :, :W]

    return [x_nchw] + [extract(o) for o in outs]


# ----------------------------------------------------------------------------
# Pure-JAX reference (for a correctness assertion)
# ----------------------------------------------------------------------------
def _conv_ref(x_nhwc, w_hwio, b):
    y = lax.conv_general_dilated(x_nhwc, w_hwio, (1, 1), "SAME",
                                 dimension_numbers=("NHWC", "HWIO", "NHWC"))
    return y + b.reshape(1, 1, 1, -1)


def encoder_forward_ref(x_nchw, params, eps=1e-5):
    x = jnp.transpose(x_nchw, (0, 2, 3, 1))
    feats = [x]
    feats.append(_conv_ref(feats[-1], params["conv_stem"]["w"],
                           params["conv_stem"]["b"]))
    bn = params["bn1"]
    inv_std = 1.0 / jnp.sqrt(bn["var"] + eps)
    feats.append(feats[-1] * (bn["gamma"] * inv_std)
                 + (bn["beta"] - bn["mean"] * bn["gamma"] * inv_std))
    feats.append(jnp.maximum(feats[-1], 0.0))
    for blk in params["blocks"]:
        feats.append(jnp.maximum(_conv_ref(feats[-1], blk["w"], blk["b"]), 0.0))
    return [jnp.transpose(f, (0, 3, 1, 2)) for f in feats]


# ----------------------------------------------------------------------------
# Deterministic parameter construction
# ----------------------------------------------------------------------------
def make_params(key, cin, c1, c2):
    k = jax.random.split(key, 6)
    return {
        "conv_stem": {
            "w": 0.1 * jax.random.normal(k[0], (3, 3, cin, c1), jnp.float32),
            "b": 0.01 * jnp.arange(c1, dtype=jnp.float32),
        },
        "bn1": {
            "gamma": 1.0 + 0.1 * jnp.arange(c1, dtype=jnp.float32),
            "beta": 0.05 * jnp.arange(c1, dtype=jnp.float32),
            "mean": 0.01 * jnp.arange(c1, dtype=jnp.float32),
            "var": 1.0 + 0.02 * jnp.arange(c1, dtype=jnp.float32),
        },
        "blocks": [
            {
                "w": 0.1 * jax.random.normal(k[1], (3, 3, c1, c1), jnp.float32),
                "b": 0.02 * jnp.arange(c1, dtype=jnp.float32),
            },
            {
                "w": 0.1 * jax.random.normal(k[2], (3, 3, c1, c2), jnp.float32),
                "b": 0.03 * jnp.arange(c2, dtype=jnp.float32),
            },
        ],
    }


if __name__ == "__main__":
    key = jax.random.PRNGKey(0)
    kx, kp = jax.random.split(key)

    N, Cin, H, W = 2, 4, 16, 16
    C1, C2 = 8, 16
    x = jax.random.normal(kx, (N, Cin, H, W), jnp.float32)
    params = make_params(kp, Cin, C1, C2)

    fwd = jax.jit(encoder_forward)
    feats = fwd(x, params)
    feats = [jax.block_until_ready(f) for f in feats]

    refs = encoder_forward_ref(x, params)
    assert len(feats) == 6
    expected_shapes = [(N, Cin, H, W), (N, C1, H, W), (N, C1, H, W),
                       (N, C1, H, W), (N, C1, H, W), (N, C2, H, W)]
    for f, r, s in zip(feats, refs, expected_shapes):
        assert f.shape == s, (f.shape, s)
        assert jnp.allclose(f, r, rtol=1e-4, atol=1e-4), "mismatch vs reference"

    print("KERNEL_OK")
</pallas_src>

<mosaic_0001>
module attributes {stable_mosaic.version = 11 : i64} {
  func.func @kernel(%arg0: i32, %arg1: memref<1x4x456xf32, #tpu.memory_space<vmem>>, %arg2: memref<8x36xf32, #tpu.memory_space<vmem>>, %arg3: memref<8x1xf32, #tpu.memory_space<vmem>>, %arg4: memref<8x1xf32, #tpu.memory_space<vmem>>, %arg5: memref<8x1xf32, #tpu.memory_space<vmem>>, %arg6: memref<8x72xf32, #tpu.memory_space<vmem>>, %arg7: memref<8x1xf32, #tpu.memory_space<vmem>>, %arg8: memref<16x72xf32, #tpu.memory_space<vmem>>, %arg9: memref<16x1xf32, #tpu.memory_space<vmem>>, %arg10: memref<1x8x384xf32, #tpu.memory_space<vmem>>, %arg11: memref<1x8x384xf32, #tpu.memory_space<vmem>>, %arg12: memref<1x8x384xf32, #tpu.memory_space<vmem>>, %arg13: memref<1x8x384xf32, #tpu.memory_space<vmem>>, %arg14: memref<1x16x384xf32, #tpu.memory_space<vmem>>, %arg15: memref<72x384xf32, #tpu.memory_space<vmem>>, %arg16: memref<8x456xf32, #tpu.memory_space<vmem>>, %arg17: memref<8x456xf32, #tpu.memory_space<vmem>>) attributes {dimension_semantics = [#tpu.dimension_semantics<parallel>], iteration_bounds = array<i64: 2>, scalar_prefetch = 0 : i64, scratch_operands = 3 : i64, tpu.core_type = #tpu.core_type<tc>, window_params = [{transform_indices = @transform_0, window_bounds = array<i64: 1, 4, 456>}, {pipeline_mode = #tpu.pipeline_mode<synchronous>, transform_indices = @transform_1, window_bounds = array<i64: 8, 36>}, {pipeline_mode = #tpu.pipeline_mode<synchronous>, transform_indices = @transform_2, window_bounds = array<i64: 8, 1>}, {pipeline_mode = #tpu.pipeline_mode<synchronous>, transform_indices = @transform_3, window_bounds = array<i64: 8, 1>}, {pipeline_mode = #tpu.pipeline_mode<synchronous>, transform_indices = @transform_4, window_bounds = array<i64: 8, 1>}, {pipeline_mode = #tpu.pipeline_mode<synchronous>, transform_indices = @transform_5, window_bounds = array<i64: 8, 72>}, {pipeline_mode = #tpu.pipeline_mode<synchronous>, transform_indices = @transform_6, window_bounds = array<i64: 8, 1>}, {pipeline_mode = #tpu.pipeline_mode<synchronous>, transform_indices = @transform_7, window_bounds = array<i64: 16, 72>}, {pipeline_mode = #tpu.pipeline_mode<synchronous>, transform_indices = @transform_8, window_bounds = array<i64: 16, 1>}, {transform_indices = @transform_9, window_bounds = array<i64: 1, 8, 384>}, {transform_indices = @transform_10, window_bounds = array<i64: 1, 8, 384>}, {transform_indices = @transform_11, window_bounds = array<i64: 1, 8, 384>}, {transform_indices = @transform_12, window_bounds = array<i64: 1, 8, 384>}, {transform_indices = @transform_13, window_bounds = array<i64: 1, 16, 384>}]} {
    %0 = tpu.iota {dimensions = array<i32: 1>} : vector<1x384xi32>
    %c24_i32 = arith.constant 24 : i32
    %c0_i32 = arith.constant 0 : i32
    %1 = arith.cmpi eq, %c24_i32, %c0_i32 : i32
    %c1_i32 = arith.constant 1 : i32
    %2 = arith.select %1, %c1_i32, %c24_i32 : i32
    %3 = vector.broadcast %2 : i32 to vector<1x384xi32>
    %4 = arith.remsi %0, %3 : vector<1x384xi32>
    %c0_i32_0 = arith.constant 0 : i32
    %5 = vector.broadcast %c0_i32_0 : i32 to vector<1x384xi32>
    %6 = arith.cmpi ne, %4, %5 : vector<1x384xi32>
    %c0_i32_1 = arith.constant 0 : i32
    %7 = vector.broadcast %c0_i32_1 : i32 to vector<1x384xi32>
    %8 = arith.cmpi slt, %4, %7 : vector<1x384xi32>
    %c0_i32_2 = arith.constant 0 : i32
    %9 = arith.cmpi slt, %2, %c0_i32_2 : i32
    %10 = vector.broadcast %9 : i1 to vector<1x384xi1>
    %11 = vector.broadcast %10 : vector<1x384xi1> to vector<1x384xi1>
    %12 = arith.xori %8, %11 : vector<1x384xi1>
    %13 = arith.andi %12, %6 : vector<1x384xi1>
    %14 = vector.broadcast %2 : i32 to vector<1x384xi32>
    %15 = arith.addi %4, %14 : vector<1x384xi32>
    %16 = arith.select %13, %15, %4 : vector<1x384xi1>, vector<1x384xi32>
    %c16_i32 = arith.constant 16 : i32
    %17 = vector.broadcast %c16_i32 : i32 to vector<1x384xi32>
    %18 = arith.cmpi slt, %16, %17 : vector<1x384xi32>
    %c0 = arith.constant 0 : index
    %c0_3 = arith.constant 0 : index
    %19 = vector.load %arg2[%c0, %c0_3] : memref<8x36xf32, #tpu.memory_space<vmem>>, vector<8x36xf32>
    %c0_4 = arith.constant 0 : index
    %c0_5 = arith.constant 0 : index
    %c0_6 = arith.constant 0 : index
    %20 = vector.load %arg1[%c0_4, %c0_5, %c0_6] : memref<1x4x456xf32, #tpu.memory_space<vmem>>, vector<1x4x384xf32>
    %21 = vector.shape_cast %20 : vector<1x4x384xf32> to vector<4x384xf32>
    %c0_7 = arith.constant 0 : index
    %c0_8 = arith.constant 0 : index
    %22 = vector.load %arg15[%c0_7, %c0_8] : memref<72x384xf32, #tpu.memory_space<vmem>>, vector<4x384xf32>
    tpu.vector_store %arg15[%c0_7, %c0_8], %21 {strides = array<i32>} : memref<72x384xf32, #tpu.memory_space<vmem>>, vector<4x384xf32>,
    %c0_9 = arith.constant 0 : index
    %c0_10 = arith.constant 0 : index
    %c1 = arith.constant 1 : index
    %23 = vector.load %arg1[%c0_9, %c0_10, %c1] : memref<1x4x456xf32, #tpu.memory_space<vmem>>, vector<1x4x384xf32>
    %24 = vector.shape_cast %23 : vector<1x4x384xf32> to vector<4x384xf32>
    %c4 = arith.constant 4 : index
    %c0_11 = arith.constant 0 : index
    %25 = vector.load %arg15[%c4, %c0_11] : memref<72x384xf32, #tpu.memory_space<vmem>>, vector<4x384xf32>
    tpu.vector_store %arg15[%c4, %c0_11], %24 {strides = array<i32>} : memref<72x384xf32, #tpu.memory_space<vmem>>, vector<4x384xf32>,
    %c0_12 = arith.constant 0 : index
    %c0_13 = arith.constant 0 : index
    %c2 = arith.constant 2 : index
    %26 = vector.load %arg1[%c0_12, %c0_13, %c2] : memref<1x4x456xf32, #tpu.memory_space<vmem>>, vector<1x4x384xf32>
    %27 = vector.shape_cast %26 : vector<1x4x384xf32> to vector<4x384xf32>
    %c8 = arith.constant 8 : index
    %c0_14 = arith.constant 0 : index
    %28 = vector.load %arg15[%c8, %c0_14] : memref<72x384xf32, #tpu.memory_space<vmem>>, vector<4x384xf32>
    tpu.vector_store %arg15[%c8, %c0_14], %27 {strides = array<i32>} : memref<72x384xf32, #tpu.memory_space<vmem>>, vector<4x384xf32>,
    %c0_15 = arith.constant 0 : index
    %c0_16 = arith.constant 0 : index
    %c24 = arith.constant 24 : index
    %29 = vector.load %arg1[%c0_15, %c0_16, %c24] : memref<1x4x456xf32, #tpu.memory_space<vmem>>, vector<1x4x384xf32>
    %30 = vector.shape_cast %29 : vector<1x4x384xf32> to vector<4x384xf32>
    %c12 = arith.constant 12 : index
    %c0_17 = arith.constant 0 : index
    %31 = vector.load %arg15[%c12, %c0_17] : memref<72x384xf32, #tpu.memory_space<vmem>>, vector<4x384xf32>
    tpu.vector_store %arg15[%c12, %c0_17], %30 {strides = array<i32>} : memref<72x384xf32, #tpu.memory_space<vmem>>, vector<4x384xf32>,
    %c0_18 = arith.constant 0 : index
    %c0_19 = arith.constant 0 : index
    %c25 = arith.constant 25 : index
    %32 = vector.load %arg1[%c0_18, %c0_19, %c25] : memref<1x4x456xf32, #tpu.memory_space<vmem>>, vector<1x4x384xf32>
    %33 = vector.shape_cast %32 : vector<1x4x384xf32> to vector<4x384xf32>
    %c16 = arith.constant 16 : index
    %c0_20 = arith.constant 0 : index
    %34 = vector.load %arg15[%c16, %c0_20] : memref<72x384xf32, #tpu.memory_space<vmem>>, vector<4x384xf32>
    tpu.vector_store %arg15[%c16, %c0_20], %33 {strides = array<i32>} : memref<72x384xf32, #tpu.memory_space<vmem>>, vector<4x384xf32>,
    %c0_21 = arith.constant 0 : index
    %c0_22 = arith.constant 0 : index
    %c26 = arith.constant 26 : index
    %35 = vector.load %arg1[%c0_21, %c0_22, %c26] : memref<1x4x456xf32, #tpu.memory_space<vmem>>, vector<1x4x384xf32>
    %36 = vector.shape_cast %35 : vector<1x4x384xf32> to vector<4x384xf32>
    %c20 = arith.constant 20 : index
    %c0_23 = arith.constant 0 : index
    %37 = vector.load %arg15[%c20, %c0_23] : memref<72x384xf32, #tpu.memory_space<vmem>>, vector<4x384xf32>
    tpu.vector_store %arg15[%c20, %c0_23], %36 {strides = array<i32>} : memref<72x384xf32, #tpu.memory_space<vmem>>, vector<4x384xf32>,
    %c0_24 = arith.constant 0 : index
    %c0_25 = arith.constant 0 : index
    %c48 = arith.constant 48 : index
    %38 = vector.load %arg1[%c0_24, %c0_25, %c48] : memref<1x4x456xf32, #tpu.memory_space<vmem>>, vector<1x4x384xf32>
    %39 = vector.shape_cast %38 : vector<1x4x384xf32> to vector<4x384xf32>
    %c24_26 = arith.constant 24 : index
    %c0_27 = arith.constant 0 : index
    %40 = vector.load %arg15[%c24_26, %c0_27] : memref<72x384xf32, #tpu.memory_space<vmem>>, vector<4x384xf32>
    tpu.vector_store %arg15[%c24_26, %c0_27], %39 {strides = array<i32>} : memref<72x384xf32, #tpu.memory_space<vmem>>, vector<4x384xf32>,
    %c0_28 = arith.constant 0 : index
    %c0_29 = arith.constant 0 : index
    %c49 = arith.constant 49 : index
    %41 = vector.load %arg1[%c0_28, %c0_29, %c49] : memref<1x4x456xf32, #tpu.memory_space<vmem>>, vector<1x4x384xf32>
    %42 = vector.shape_cast %41 : vector<1x4x384xf32> to vector<4x384xf32>
    %c28 = arith.constant 28 : index
    %c0_30 = arith.constant 0 : index
    %43 = vector.load %arg15[%c28, %c0_30] : memref<72x384xf32, #tpu.memory_space<vmem>>, vector<4x384xf32>
    tpu.vector_store %arg15[%c28, %c0_30], %42 {strides = array<i32>} : memref<72x384xf32, #tpu.memory_space<vmem>>, vector<4x384xf32>,
    %c0_31 = arith.constant 0 : index
    %c0_32 = arith.constant 0 : index
    %c50 = arith.constant 50 : index
    %44 = vector.load %arg1[%c0_31, %c0_32, %c50] : memref<1x4x456xf32, #tpu.memory_space<vmem>>, vector<1x4x384xf32>
    %45 = vector.shape_cast %44 : vector<1x4x384xf32> to vector<4x384xf32>
    %c32 = arith.constant 32 : index
    %c0_33 = arith.constant 0 : index
    %46 = vector.load %arg15[%c32, %c0_33] : memref<72x384xf32, #tpu.memory_space<vmem>>, vector<4x384xf32>
    tpu.vector_store %arg15[%c32, %c0_33], %45 {strides = array<i32>} : memref<72x384xf32, #tpu.memory_space<vmem>>, vector<4x384xf32>,
    %c0_34 = arith.constant 0 : index
    %c0_35 = arith.constant 0 : index
    %47 = vector.load %arg15[%c0_34, %c0_35] : memref<72x384xf32, #tpu.memory_space<vmem>>, vector<36x384xf32>
    %cst = arith.constant dense<0.000000e+00> : vector<8x384xf32>
    %48 = tpu.matmul %19, %47, %cst {dimension_numbers = #tpu.dot_dimension_numbers<[1], [0], [0], [1], [0, 0, 1, 1], [], []>} : vector<8x36xf32>, vector<36x384xf32>, vector<8x384xf32> -> vector<8x384xf32>
    %c0_36 = arith.constant 0 : index
    %c0_37 = arith.constant 0 : index
    %49 = vector.load %arg3[%c0_36, %c0_37] : memref<8x1xf32, #tpu.memory_space<vmem>>, vector<8x1xf32>
    %50 = vector.broadcast %49 : vector<8x1xf32> to vector<8x384xf32>
    %51 = arith.addf %48, %50 : vector<8x384xf32>
    %c0_38 = arith.constant 0 : index
    %c0_39 = arith.constant 0 : index
    %52 = vector.load %arg4[%c0_38, %c0_39] : memref<8x1xf32, #tpu.memory_space<vmem>>, vector<8x1xf32>
    %53 = vector.broadcast %52 : vector<8x1xf32> to vector<8x384xf32>
    %54 = arith.mulf %51, %53 : vector<8x384xf32>
    %c0_40 = arith.constant 0 : index
    %c0_41 = arith.constant 0 : index
    %55 = vector.load %arg5[%c0_40, %c0_41] : memref<8x1xf32, #tpu.memory_space<vmem>>, vector<8x1xf32>
    %56 = vector.broadcast %55 : vector<8x1xf32> to vector<8x384xf32>
    %57 = arith.addf %54, %56 : vector<8x384xf32>
    %cst_42 = arith.constant 0.000000e+00 : f32
    %58 = vector.broadcast %cst_42 : f32 to vector<8x384xf32>
    %59 = arith.maximumf %57, %58 : vector<8x384xf32>
    %c0_43 = arith.constant 0 : index
    %c0_44 = arith.constant 0 : index
    %c0_45 = arith.constant 0 : index
    %60 = vector.load %arg10[%c0_43, %c0_44, %c0_45] : memref<1x8x384xf32, #tpu.memory_space<vmem>>, vector<1x8x384xf32>
    %61 = vector.shape_cast %60 : vector<1x8x384xf32> to vector<8x384xf32>
    %62 = vector.shape_cast %51 : vector<8x384xf32> to vector<1x8x384xf32>
    tpu.vector_store %arg10[%c0_43, %c0_44, %c0_45], %62 {strides = array<i32>} : memref<1x8x384xf32, #tpu.memory_space<vmem>>, vector<1x8x384xf32>,
    %c0_46 = arith.constant 0 : index
    %c0_47 = arith.constant 0 : index
    %c0_48 = arith.constant 0 : index
    %63 = vector.load %arg11[%c0_46, %c0_47, %c0_48] : memref<1x8x384xf32, #tpu.memory_space<vmem>>, vector<1x8x384xf32>
    %64 = vector.shape_cast %63 : vector<1x8x384xf32> to vector<8x384xf32>
    %65 = vector.shape_cast %57 : vector<8x384xf32> to vector<1x8x384xf32>
    tpu.vector_store %arg11[%c0_46, %c0_47, %c0_48], %65 {strides = array<i32>} : memref<1x8x384xf32, #tpu.memory_space<vmem>>, vector<1x8x384xf32>,
    %c0_49 = arith.constant 0 : index
    %c0_50 = arith.constant 0 : index
    %c0_51 = arith.constant 0 : index
    %66 = vector.load %arg12[%c0_49, %c0_50, %c0_51] : memref<1x8x384xf32, #tpu.memory_space<vmem>>, vector<1x8x384xf32>
    %67 = vector.shape_cast %66 : vector<1x8x384xf32> to vector<8x384xf32>
    %68 = vector.shape_cast %59 : vector<8x384xf32> to vector<1x8x384xf32>
    tpu.vector_store %arg12[%c0_49, %c0_50, %c0_51], %68 {strides = array<i32>} : memref<1x8x384xf32, #tpu.memory_space<vmem>>, vector<1x8x384xf32>,
    %cst_52 = arith.constant 0.000000e+00 : f32
    %69 = vector.broadcast %cst_52 : f32 to vector<8x456xf32>
    %c0_53 = arith.constant 0 : index
    %c0_54 = arith.constant 0 : index
    %70 = vector.load %arg16[%c0_53, %c0_54] : memref<8x456xf32, #tpu.memory_space<vmem>>, vector<8x456xf32>
    tpu.vector_store %arg16[%c0_53, %c0_54], %69 {strides = array<i32>} : memref<8x456xf32, #tpu.memory_space<vmem>>, vector<8x456xf32>,
    %cst_55 = arith.constant 0.000000e+00 : f32
    %71 = vector.shape_cast %18 : vector<1x384xi1> to vector<1x384xi1>
    %72 = vector.broadcast %71 : vector<1x384xi1> to vector<8x384xi1>
    %73 = vector.broadcast %cst_55 : f32 to vector<8x384xf32>
    %74 = arith.select %72, %59, %73 : vector<8x384xi1>, vector<8x384xf32>
    %c0_56 = arith.constant 0 : index
    %c25_57 = arith.constant 25 : index
    %75 = vector.load %arg16[%c0_56, %c25_57] : memref<8x456xf32, #tpu.memory_space<vmem>>, vector<8x384xf32>
    tpu.vector_store %arg16[%c0_56, %c25_57], %74 {strides = array<i32>} : memref<8x456xf32, #tpu.memory_space<vmem>>, vector<8x384xf32>,
    %c0_58 = arith.constant 0 : index
    %c0_59 = arith.constant 0 : index
    %76 = vector.load %arg16[%c0_58, %c0_59] : memref<8x456xf32, #tpu.memory_space<vmem>>, vector<8x384xf32>
    %c0_60 = arith.constant 0 : index
    %c0_61 = arith.constant 0 : index
    %77 = vector.load %arg15[%c0_60, %c0_61] : memref<72x384xf32, #tpu.memory_space<vmem>>, vector<8x384xf32>
    tpu.vector_store %arg15[%c0_60, %c0_61], %76 {strides = array<i32>} : memref<72x384xf32, #tpu.memory_space<vmem>>, vector<8x384xf32>,
    %c0_62 = arith.constant 0 : index
    %c1_63 = arith.constant 1 : index
    %78 = vector.load %arg16[%c0_62, %c1_63] : memref<8x456xf32, #tpu.memory_space<vmem>>, vector<8x384xf32>
    %c8_64 = arith.constant 8 : index
    %c0_65 = arith.constant 0 : index
    %79 = vector.load %arg15[%c8_64, %c0_65] : memref<72x384xf32, #tpu.memory_space<vmem>>, vector<8x384xf32>
    tpu.vector_store %arg15[%c8_64, %c0_65], %78 {strides = array<i32>} : memref<72x384xf32, #tpu.memory_space<vmem>>, vector<8x384xf32>,
    %c0_66 = arith.constant 0 : index
    %c2_67 = arith.constant 2 : index
    %80 = vector.load %arg16[%c0_66, %c2_67] : memref<8x456xf32, #tpu.memory_space<vmem>>, vector<8x384xf32>
    %c16_68 = arith.constant 16 : index
    %c0_69 = arith.constant 0 : index
    %81 = vector.load %arg15[%c16_68, %c0_69] : memref<72x384xf32, #tpu.memory_space<vmem>>, vector<8x384xf32>
    tpu.vector_store %arg15[%c16_68, %c0_69], %80 {strides = array<i32>} : memref<72x384xf32, #tpu.memory_space<vmem>>, vector<8x384xf32>,
    %c0_70 = arith.constant 0 : index
    %c24_71 = arith.constant 24 : index
    %82 = vector.load %arg16[%c0_70, %c24_71] : memref<8x456xf32, #tpu.memory_space<vmem>>, vector<8x384xf32>
    %c24_72 = arith.constant 24 : index
    %c0_73 = arith.constant 0 : index
    %83 = vector.load %arg15[%c24_72, %c0_73] : memref<72x384xf32, #tpu.memory_space<vmem>>, vector<8x384xf32>
    tpu.vector_store %arg15[%c24_72, %c0_73], %82 {strides = array<i32>} : memref<72x384xf32, #tpu.memory_space<vmem>>, vector<8x384xf32>,
    %c0_74 = arith.constant 0 : index
    %c25_75 = arith.constant 25 : index
    %84 = vector.load %arg16[%c0_74, %c25_75] : memref<8x456xf32, #tpu.memory_space<vmem>>, vector<8x384xf32>
    %c32_76 = arith.constant 32 : index
    %c0_77 = arith.constant 0 : index
    %85 = vector.load %arg15[%c32_76, %c0_77] : memref<72x384xf32, #tpu.memory_space<vmem>>, vector<8x384xf32>
    tpu.vector_store %arg15[%c32_76, %c0_77], %84 {strides = array<i32>} : memref<72x384xf32, #tpu.memory_space<vmem>>, vector<8x384xf32>,
    %c0_78 = arith.constant 0 : index
    %c26_79 = arith.constant 26 : index
    %86 = vector.load %arg16[%c0_78, %c26_79] : memref<8x456xf32, #tpu.memory_space<vmem>>, vector<8x384xf32>
    %c40 = arith.constant 40 : index
    %c0_80 = arith.constant 0 : index
    %87 = vector.load %arg15[%c40, %c0_80] : memref<72x384xf32, #tpu.memory_space<vmem>>, vector<8x384xf32>
    tpu.vector_store %arg15[%c40, %c0_80], %86 {strides = array<i32>} : memref<72x384xf32, #tpu.memory_space<vmem>>, vector<8x384xf32>,
    %c0_81 = arith.constant 0 : index
    %c48_82 = arith.constant 48 : index
    %88 = vector.load %arg16[%c0_81, %c48_82] : memref<8x456xf32, #tpu.memory_space<vmem>>, vector<8x384xf32>
    %c48_83 = arith.constant 48 : index
    %c0_84 = arith.constant 0 : index
    %89 = vector.load %arg15[%c48_83, %c0_84] : memref<72x384xf32, #tpu.memory_space<vmem>>, vector<8x384xf32>
    tpu.vector_store %arg15[%c48_83, %c0_84], %88 {strides = array<i32>} : memref<72x384xf32, #tpu.memory_space<vmem>>, vector<8x384xf32>,
    %c0_85 = arith.constant 0 : index
    %c49_86 = arith.constant 49 : index
    %90 = vector.load %arg16[%c0_85, %c49_86] : memref<8x456xf32, #tpu.memory_space<vmem>>, vector<8x384xf32>
    %c56 = arith.constant 56 : index
    %c0_87 = arith.constant 0 : index
    %91 = vector.load %arg15[%c56, %c0_87] : memref<72x384xf32, #tpu.memory_space<vmem>>, vector<8x384xf32>
    tpu.vector_store %arg15[%c56, %c0_87], %90 {strides = array<i32>} : memref<72x384xf32, #tpu.memory_space<vmem>>, vector<8x384xf32>,
    %c0_88 = arith.constant 0 : index
    %c50_89 = arith.constant 50 : index
    %92 = vector.load %arg16[%c0_88, %c50_89] : memref<8x456xf32, #tpu.memory_space<vmem>>, vector<8x384xf32>
    %c64 = arith.constant 64 : index
    %c0_90 = arith.constant 0 : index
    %93 = vector.load %arg15[%c64, %c0_90] : memref<72x384xf32, #tpu.memory_space<vmem>>, vector<8x384xf32>
    tpu.vector_store %arg15[%c64, %c0_90], %92 {strides = array<i32>} : memref<72x384xf32, #tpu.memory_space<vmem>>, vector<8x384xf32>,
    %c0_91 = arith.constant 0 : index
    %c0_92 = arith.constant 0 : index
    %94 = vector.load %arg15[%c0_91, %c0_92] : memref<72x384xf32, #tpu.memory_space<vmem>>, vector<72x384xf32>
    %c0_93 = arith.constant 0 : index
    %c0_94 = arith.constant 0 : index
    %95 = vector.load %arg6[%c0_93, %c0_94] : memref<8x72xf32, #tpu.memory_space<vmem>>, vector<8x72xf32>
    %cst_95 = arith.constant dense<0.000000e+00> : vector<8x384xf32>
    %96 = tpu.matmul %95, %94, %cst_95 {dimension_numbers = #tpu.dot_dimension_numbers<[1], [0], [0], [1], [0, 0, 1, 1], [], []>} : vector<8x72xf32>, vector<72x384xf32>, vector<8x384xf32> -> vector<8x384xf32>
    %c0_96 = arith.constant 0 : index
    %c0_97 = arith.constant 0 : index
    %97 = vector.load %arg7[%c0_96, %c0_97] : memref<8x1xf32, #tpu.memory_space<vmem>>, vector<8x1xf32>
    %98 = vector.broadcast %97 : vector<8x1xf32> to vector<8x384xf32>
    %99 = arith.addf %96, %98 : vector<8x384xf32>
    %cst_98 = arith.constant 0.000000e+00 : f32
    %100 = vector.broadcast %cst_98 : f32 to vector<8x384xf32>
    %101 = arith.maximumf %99, %100 : vector<8x384xf32>
    %c0_99 = arith.constant 0 : index
    %c0_100 = arith.constant 0 : index
    %c0_101 = arith.constant 0 : index
    %102 = vector.load %arg13[%c0_99, %c0_100, %c0_101] : memref<1x8x384xf32, #tpu.memory_space<vmem>>, vector<1x8x384xf32>
    %103 = vector.shape_cast %102 : vector<1x8x384xf32> to vector<8x384xf32>
    %104 = vector.shape_cast %101 : vector<8x384xf32> to vector<1x8x384xf32>
    tpu.vector_store %arg13[%c0_99, %c0_100, %c0_101], %104 {strides = array<i32>} : memref<1x8x384xf32, #tpu.memory_space<vmem>>, vector<1x8x384xf32>,
    %cst_102 = arith.constant 0.000000e+00 : f32
    %105 = vector.broadcast %cst_102 : f32 to vector<8x456xf32>
    %c0_103 = arith.constant 0 : index
    %c0_104 = arith.constant 0 : index
    %106 = vector.load %arg17[%c0_103, %c0_104] : memref<8x456xf32, #tpu.memory_space<vmem>>, vector<8x456xf32>
    tpu.vector_store %arg17[%c0_103, %c0_104], %105 {strides = array<i32>} : memref<8x456xf32, #tpu.memory_space<vmem>>, vector<8x456xf32>,
    %cst_105 = arith.constant 0.000000e+00 : f32
    %107 = vector.shape_cast %18 : vector<1x384xi1> to vector<1x384xi1>
    %108 = vector.broadcast %107 : vector<1x384xi1> to vector<8x384xi1>
    %109 = vector.broadcast %cst_105 : f32 to vector<8x384xf32>
    %110 = arith.select %108, %101, %109 : vector<8x384xi1>, vector<8x384xf32>
    %c0_106 = arith.constant 0 : index
    %c25_107 = arith.constant 25 : index
    %111 = vector.load %arg17[%c0_106, %c25_107] : memref<8x456xf32, #tpu.memory_space<vmem>>, vector<8x384xf32>
    tpu.vector_store %arg17[%c0_106, %c25_107], %110 {strides = array<i32>} : memref<8x456xf32, #tpu.memory_space<vmem>>, vector<8x384xf32>,
    %c0_108 = arith.constant 0 : index
    %c0_109 = arith.constant 0 : index
    %112 = vector.load %arg17[%c0_108, %c0_109] : memref<8x456xf32, #tpu.memory_space<vmem>>, vector<8x384xf32>
    %c0_110 = arith.constant 0 : index
    %c0_111 = arith.constant 0 : index
    %113 = vector.load %arg15[%c0_110, %c0_111] : memref<72x384xf32, #tpu.memory_space<vmem>>, vector<8x384xf32>
    tpu.vector_store %arg15[%c0_110, %c0_111], %112 {strides = array<i32>} : memref<72x384xf32, #tpu.memory_space<vmem>>, vector<8x384xf32>,
    %c0_112 = arith.constant 0 : index
    %c1_113 = arith.constant 1 : index
    %114 = vector.load %arg17[%c0_112, %c1_113] : memref<8x456xf32, #tpu.memory_space<vmem>>, vector<8x384xf32>
    %c8_114 = arith.constant 8 : index
    %c0_115 = arith.constant 0 : index
    %115 = vector.load %arg15[%c8_114, %c0_115] : memref<72x384xf32, #tpu.memory_space<vmem>>, vector<8x384xf32>
    tpu.vector_store %arg15[%c8_114, %c0_115], %114 {strides = array<i32>} : memref<72x384xf32, #tpu.memory_space<vmem>>, vector<8x384xf32>,
    %c0_116 = arith.constant 0 : index
    %c2_117 = arith.constant 2 : index
    %116 = vector.load %arg17[%c0_116, %c2_117] : memref<8x456xf32, #tpu.memory_space<vmem>>, vector<8x384xf32>
    %c16_118 = arith.constant 16 : index
    %c0_119 = arith.constant 0 : index
    %117 = vector.load %arg15[%c16_118, %c0_119] : memref<72x384xf32, #tpu.memory_space<vmem>>, vector<8x384xf32>
    tpu.vector_store %arg15[%c16_118, %c0_119], %116 {strides = array<i32>} : memref<72x384xf32, #tpu.memory_space<vmem>>, vector<8x384xf32>,
    %c0_120 = arith.constant 0 : index
    %c24_121 = arith.constant 24 : index
    %118 = vector.load %arg17[%c0_120, %c24_121] : memref<8x456xf32, #tpu.memory_space<vmem>>, vector<8x384xf32>
    %c24_122 = arith.constant 24 : index
    %c0_123 = arith.constant 0 : index
    %119 = vector.load %arg15[%c24_122, %c0_123] : memref<72x384xf32, #tpu.memory_space<vmem>>, vector<8x384xf32>
    tpu.vector_store %arg15[%c24_122, %c0_123], %118 {strides = array<i32>} : memref<72x384xf32, #tpu.memory_space<vmem>>, vector<8x384xf32>,
    %c0_124 = arith.constant 0 : index
    %c25_125 = arith.constant 25 : index
    %120 = vector.load %arg17[%c0_124, %c25_125] : memref<8x456xf32, #tpu.memory_space<vmem>>, vector<8x384xf32>
    %c32_126 = arith.constant 32 : index
    %c0_127 = arith.constant 0 : index
    %121 = vector.load %arg15[%c32_126, %c0_127] : memref<72x384xf32, #tpu.memory_space<vmem>>, vector<8x384xf32>
    tpu.vector_store %arg15[%c32_126, %c0_127], %120 {strides = array<i32>} : memref<72x384xf32, #tpu.memory_space<vmem>>, vector<8x384xf32>,
    %c0_128 = arith.constant 0 : index
    %c26_129 = arith.constant 26 : index
    %122 = vector.load %arg17[%c0_128, %c26_129] : memref<8x456xf32, #tpu.memory_space<vmem>>, vector<8x384xf32>
    %c40_130 = arith.constant 40 : index
    %c0_131 = arith.constant 0 : index
    %123 = vector.load %arg15[%c40_130, %c0_131] : memref<72x384xf32, #tpu.memory_space<vmem>>, vector<8x384xf32>
    tpu.vector_store %arg15[%c40_130, %c0_131], %122 {strides = array<i32>} : memref<72x384xf32, #tpu.memory_space<vmem>>, vector<8x384xf32>,
    %c0_132 = arith.constant 0 : index
    %c48_133 = arith.constant 48 : index
    %124 = vector.load %arg17[%c0_132, %c48_133] : memref<8x456xf32, #tpu.memory_space<vmem>>, vector<8x384xf32>
    %c48_134 = arith.constant 48 : index
    %c0_135 = arith.constant 0 : index
    %125 = vector.load %arg15[%c48_134, %c0_135] : memref<72x384xf32, #tpu.memory_space<vmem>>, vector<8x384xf32>
    tpu.vector_store %arg15[%c48_134, %c0_135], %124 {strides = array<i32>} : memref<72x384xf32, #tpu.memory_space<vmem>>, vector<8x384xf32>,
    %c0_136 = arith.constant 0 : index
    %c49_137 = arith.constant 49 : index
    %126 = vector.load %arg17[%c0_136, %c49_137] : memref<8x456xf32, #tpu.memory_space<vmem>>, vector<8x384xf32>
    %c56_138 = arith.constant 56 : index
    %c0_139 = arith.constant 0 : index
    %127 = vector.load %arg15[%c56_138, %c0_139] : memref<72x384xf32, #tpu.memory_space<vmem>>, vector<8x384xf32>
    tpu.vector_store %arg15[%c56_138, %c0_139], %126 {strides = array<i32>} : memref<72x384xf32, #tpu.memory_space<vmem>>, vector<8x384xf32>,
    %c0_140 = arith.constant 0 : index
    %c50_141 = arith.constant 50 : index
    %128 = vector.load %arg17[%c0_140, %c50_141] : memref<8x456xf32, #tpu.memory_space<vmem>>, vector<8x384xf32>
    %c64_142 = arith.constant 64 : index
    %c0_143 = arith.constant 0 : index
    %129 = vector.load %arg15[%c64_142, %c0_143] : memref<72x384xf32, #tpu.memory_space<vmem>>, vector<8x384xf32>
    tpu.vector_store %arg15[%c64_142, %c0_143], %128 {strides = array<i32>} : memref<72x384xf32, #tpu.memory_space<vmem>>, vector<8x384xf32>,
    %c0_144 = arith.constant 0 : index
    %c0_145 = arith.constant 0 : index
    %130 = vector.load %arg15[%c0_144, %c0_145] : memref<72x384xf32, #tpu.memory_space<vmem>>, vector<72x384xf32>
    %c0_146 = arith.constant 0 : index
    %c0_147 = arith.constant 0 : index
    %131 = vector.load %arg8[%c0_146, %c0_147] : memref<16x72xf32, #tpu.memory_space<vmem>>, vector<16x72xf32>
    %cst_148 = arith.constant dense<0.000000e+00> : vector<16x384xf32>
    %132 = tpu.matmul %131, %130, %cst_148 {dimension_numbers = #tpu.dot_dimension_numbers<[1], [0], [0], [1], [0, 0, 1, 1], [], []>} : vector<16x72xf32>, vector<72x384xf32>, vector<16x384xf32> -> vector<16x384xf32>
    %c0_149 = arith.constant 0 : index
    %c0_150 = arith.constant 0 : index
    %133 = vector.load %arg9[%c0_149, %c0_150] : memref<16x1xf32, #tpu.memory_space<vmem>>, vector<16x1xf32>
    %134 = vector.broadcast %133 : vector<16x1xf32> to vector<16x384xf32>
    %135 = arith.addf %132, %134 : vector<16x384xf32>
    %cst_151 = arith.constant 0.000000e+00 : f32
    %136 = vector.broadcast %cst_151 : f32 to vector<16x384xf32>
    %137 = arith.maximumf %135, %136 : vector<16x384xf32>
    %c0_152 = arith.constant 0 : index
    %c0_153 = arith.constant 0 : index
    %c0_154 = arith.constant 0 : index
    %138 = vector.load %arg14[%c0_152, %c0_153, %c0_154] : memref<1x16x384xf32, #tpu.memory_space<vmem>>, vector<1x16x384xf32>
    %139 = vector.shape_cast %138 : vector<1x16x384xf32> to vector<16x384xf32>
    %140 = vector.shape_cast %137 : vector<16x384xf32> to vector<1x16x384xf32>
    tpu.vector_store %arg14[%c0_152, %c0_153, %c0_154], %140 {strides = array<i32>} : memref<1x16x384xf32, #tpu.memory_space<vmem>>, vector<1x16x384xf32>,
    return
  }
  func.func @transform_0(%arg0: i32) -> (i32, i32, i32) {
    %c0_i32 = arith.constant 0 : i32
    %c0_i32_0 = arith.constant 0 : i32
    %c0_i32_1 = arith.constant 0 : i32
    return %arg0, %c0_i32, %c0_i32_0 : i32, i32, i32
  }
  func.func @transform_1(%arg0: i32) -> (i32, i32) {
    %c0_i32 = arith.constant 0 : i32
    %c0_i32_0 = arith.constant 0 : i32
    %c0_i32_1 = arith.constant 0 : i32
    return %c0_i32, %c0_i32_0 : i32, i32
  }
  func.func @transform_2(%arg0: i32) -> (i32, i32) {
    %c0_i32 = arith.constant 0 : i32
    %c0_i32_0 = arith.constant 0 : i32
    %c0_i32_1 = arith.constant 0 : i32
    return %c0_i32, %c0_i32_0 : i32, i32
  }
  func.func @transform_3(%arg0: i32) -> (i32, i32) {
    %c0_i32 = arith.constant 0 : i32
    %c0_i32_0 = arith.constant 0 : i32
    %c0_i32_1 = arith.constant 0 : i32
    return %c0_i32, %c0_i32_0 : i32, i32
  }
  func.func @transform_4(%arg0: i32) -> (i32, i32) {
    %c0_i32 = arith.constant 0 : i32
    %c0_i32_0 = arith.constant 0 : i32
    %c0_i32_1 = arith.constant 0 : i32
    return %c0_i32, %c0_i32_0 : i32, i32
  }
  func.func @transform_5(%arg0: i32) -> (i32, i32) {
    %c0_i32 = arith.constant 0 : i32
    %c0_i32_0 = arith.constant 0 : i32
    %c0_i32_1 = arith.constant 0 : i32
    return %c0_i32, %c0_i32_0 : i32, i32
  }
  func.func @transform_6(%arg0: i32) -> (i32, i32) {
    %c0_i32 = arith.constant 0 : i32
    %c0_i32_0 = arith.constant 0 : i32
    %c0_i32_1 = arith.constant 0 : i32
    return %c0_i32, %c0_i32_0 : i32, i32
  }
  func.func @transform_7(%arg0: i32) -> (i32, i32) {
    %c0_i32 = arith.constant 0 : i32
    %c0_i32_0 = arith.constant 0 : i32
    %c0_i32_1 = arith.constant 0 : i32
    return %c0_i32, %c0_i32_0 : i32, i32
  }
  func.func @transform_8(%arg0: i32) -> (i32, i32) {
    %c0_i32 = arith.constant 0 : i32
    %c0_i32_0 = arith.constant 0 : i32
    %c0_i32_1 = arith.constant 0 : i32
    return %c0_i32, %c0_i32_0 : i32, i32
  }
  func.func @transform_9(%arg0: i32) -> (i32, i32, i32) {
    %c0_i32 = arith.constant 0 : i32
    %c0_i32_0 = arith.constant 0 : i32
    %c0_i32_1 = arith.constant 0 : i32
    return %arg0, %c0_i32, %c0_i32_0 : i32, i32, i32
  }
  func.func @transform_10(%arg0: i32) -> (i32, i32, i32) {
    %c0_i32 = arith.constant 0 : i32
    %c0_i32_0 = arith.constant 0 : i32
    %c0_i32_1 = arith.constant 0 : i32
    return %arg0, %c0_i32, %c0_i32_0 : i32, i32, i32
  }
  func.func @transform_11(%arg0: i32) -> (i32, i32, i32) {
    %c0_i32 = arith.constant 0 : i32
    %c0_i32_0 = arith.constant 0 : i32
    %c0_i32_1 = arith.constant 0 : i32
    return %arg0, %c0_i32, %c0_i32_0 : i32, i32, i32
  }
  func.func @transform_12(%arg0: i32) -> (i32, i32, i32) {
    %c0_i32 = arith.constant 0 : i32
    %c0_i32_0 = arith.constant 0 : i32
    %c0_i32_1 = arith.constant 0 : i32
    return %arg0, %c0_i32, %c0_i32_0 : i32, i32, i32
  }
  func.func @transform_13(%arg0: i32) -> (i32, i32, i32) {
    %c0_i32 = arith.constant 0 : i32
    %c0_i32_0 = arith.constant 0 : i32
    %c0_i32_1 = arith.constant 0 : i32
    return %arg0, %c0_i32, %c0_i32_0 : i32, i32, i32
  }
}

</mosaic_0001>

<llo_original>
// kernel: encoder_forward.1
$region0: #{encoder_forward.1}
  #allocation0 [shape = 'u32[]', space=smem, size = 0x4, offset = 0x4, fixed_abs, tag = 'smem constant byte address 0x4 - core index']
  #allocation1 [shape = 'u32[144,128]{1,0:T(1,128)}', space=vmem, size = 0x12000, scoped, tag = 'internal scratch']
  #allocation2 [shape = 'f32[72,384]{1,0:T(8,128)}', space=vmem, size = 0x1b000, scoped, tag = 'scratch operand']
  #allocation3 [shape = 'f32[8,456]{1,0:T(8,128)}', space=vmem, size = 0x4000, scoped, tag = 'scratch operand']
  #allocation4 [shape = 'f32[8,456]{1,0:T(8,128)}', space=vmem, size = 0x4000, scoped, tag = 'scratch operand']
  %s0 = inlined_call_operand.vmem [shape: f32[2,4,456], index: 0, kind: input, shape index: {}]
  %s1 = inlined_call_operand.vmem [shape: f32[8,36], index: 1, kind: input, shape index: {}]
  %s2 = inlined_call_operand.vmem [shape: f32[8,1], index: 2, kind: input, shape index: {}]
  %s3 = inlined_call_operand.vmem [shape: f32[8,1], index: 3, kind: input, shape index: {}]
  %s4 = inlined_call_operand.vmem [shape: f32[8,1], index: 4, kind: input, shape index: {}]
  %s5 = inlined_call_operand.vmem [shape: f32[8,72], index: 5, kind: input, shape index: {}]
  %s6 = inlined_call_operand.vmem [shape: f32[8,1], index: 6, kind: input, shape index: {}]
  %s7 = inlined_call_operand.vmem [shape: f32[16,72], index: 7, kind: input, shape index: {}]
  %s8 = inlined_call_operand.vmem [shape: f32[16,1], index: 8, kind: input, shape index: {}]
  %s9 = inlined_call_operand.vmem [shape: f32[2,8,384], index: 9, kind: output, shape index: {0}]
  %s10 = inlined_call_operand.vmem [shape: f32[2,8,384], index: 10, kind: output, shape index: {1}]
  %s11 = inlined_call_operand.vmem [shape: f32[2,8,384], index: 11, kind: output, shape index: {2}]
  %s12 = inlined_call_operand.vmem [shape: f32[2,8,384], index: 12, kind: output, shape index: {3}]
  %s13 = inlined_call_operand.vmem [shape: f32[2,16,384], index: 13, kind: output, shape index: {4}]
  %14 = xla_tuple %s9, %s10, %s11, %s12, %s13
  %s15 = sld [smem:[#allocation0]]
  $region101: #{encoder_forward.1} parent=0
    _
  %s17 = ssub.s32 1, %s15
  %s18 = scalar_select 0, %s17, %s15
  loop: start=0, step=1, limit=4
  $region2: #{encoder_forward.1} parent=0 // loop_pre_header
    _
  $region3: #{encoder_forward.1} parent=0 // loop_header
    %s20 = sphi 0, %s24
    %p21 = scmp.ge.s32.totalorder %s20, 4
    %s30 = sphi 0, %s32
    %s33 = sphi 0, %s30
    %s34 = sphi 0, %s33
    %s50 = sphi 0, %s34
    %s54 = sphi 0, %s54
    %s56 = sphi 0, %s54
    %s57 = sphi 0, %s56
    %s71 = sphi 0, %s57
    %s75 = sphi 0, %s75
    %s77 = sphi 0, %s75
    %s78 = sphi 0, %s77
    %s92 = sphi 0, %s78
    %s96 = sphi 0, %s96
    %s98 = sphi 0, %s96
    %s99 = sphi 0, %s98
    %s113 = sphi 0, %s99
    %s117 = sphi 0, %s117
    %s119 = sphi 0, %s117
    %s120 = sphi 0, %s119
    %s134 = sphi 0, %s120
    %s138 = sphi 0, %s138
    %s140 = sphi 0, %s138
    %s141 = sphi 0, %s140
    %s155 = sphi 0, %s141
    %s159 = sphi 0, %s159
    %s161 = sphi 0, %s159
    %s162 = sphi 0, %s161
    %s176 = sphi 0, %s162
    %s180 = sphi 0, %s180
    %s182 = sphi 0, %s180
    %s183 = sphi 0, %s182
    %s197 = sphi 0, %s183
    %s201 = sphi 0, %s201
    %s203 = sphi 0, %s201
    %s204 = sphi 0, %s203
    %s218 = sphi 0, %s204
    %s224 = sphi 0, %s226
    %s227 = sphi 0, %s224
    %s228 = sphi 0, %s227
    %s244 = sphi 0, %s228
    %s250 = sphi 0, %s252
    %s253 = sphi 0, %s250
    %s254 = sphi 0, %s253
    %s270 = sphi 0, %s254
    %s276 = sphi 0, %s278
    %s279 = sphi 0, %s276
    %s280 = sphi 0, %s279
    %s296 = sphi 0, %s280
    %s302 = sphi 0, %s304
    %s305 = sphi 0, %s302
    %s306 = sphi 0, %s305
    %s322 = sphi 0, %s306
    %s328 = sphi 0, %s330
    %s331 = sphi 0, %s328
    %s332 = sphi 0, %s331
    %s348 = sphi 0, %s332
  $region4: #{encoder_forward.1} parent=0 // loop_header_branch
    %23 = sbr.rel (%p21) target = $region8
  $region5: #{encoder_forward.1} parent=0 // loop_body
    %s25 = ssub.s32 %s20, 1
    %s26 = ssub.s32 %s20, 2
    %s27 = sadd.s32 %s20, 1
    %s28 = ssub.s32 %s20, %s27
    %p29 = scmp.eq.s32.totalorder %s28, 0
    %s31 = sadd.s32 %s30, 1
    %s32 = scalar_select %p29, %s30, %s31
    %p35 = pneg %p29
    %p36 = scmp.eq.s32.totalorder %s20, 1
    %p37 = por %p35, %p36
    %p38 = scmp.ne.s32.totalorder %s30, %s33
    %p39 = scmp.eq.s32.totalorder %s20, 0
    %p40 = por %p38, %p39
    %p41 = scmp.ne.s32.totalorder %s30, %s33
    %p42 = scmp.eq.s32.totalorder %s25, 1
    %p43 = por %p41, %p42
    %p44 = scmp.ne.s32.totalorder %s33, %s34
    %p45 = scmp.eq.s32.totalorder %s25, 0
    %p46 = por %p44, %p45
    %p47 = scmp.ne.s32.totalorder %s33, %s34
    %p48 = scmp.eq.s32.totalorder %s26, 1
    %p49 = por %p47, %p48
    %p51 = scmp.ne.s32.totalorder %s34, %s50
    %p52 = scmp.eq.s32.totalorder %s26, 0
    %p53 = por %p51, %p52
    %s55 = sadd.s32 %s54, 1
    %p58 = scmp.eq.s32.totalorder %s20, 1
    %p59 = scmp.ne.s32.totalorder %s54, %s56
    %p60 = scmp.eq.s32.totalorder %s20, 0
    %p61 = por %p59, %p60
    %p62 = scmp.ne.s32.totalorder %s54, %s56
    %p63 = scmp.eq.s32.totalorder %s25, 1
    %p64 = por %p62, %p63
    %p65 = scmp.ne.s32.totalorder %s56, %s57
    %p66 = scmp.eq.s32.totalorder %s25, 0
    %p67 = por %p65, %p66
    %p68 = scmp.ne.s32.totalorder %s56, %s57
    %p69 = scmp.eq.s32.totalorder %s26, 1
    %p70 = por %p68, %p69
    %p72 = scmp.ne.s32.totalorder %s57, %s71
    %p73 = scmp.eq.s32.totalorder %s26, 0
    %p74 = por %p72, %p73
    %s76 = sadd.s32 %s75, 1
    %p79 = scmp.eq.s32.totalorder %s20, 1
    %p80 = scmp.ne.s32.totalorder %s75, %s77
    %p81 = scmp.eq.s32.totalorder %s20, 0
    %p82 = por %p80, %p81
    %p83 = scmp.ne.s32.totalorder %s75, %s77
    %p84 = scmp.eq.s32.totalorder %s25, 1
    %p85 = por %p83, %p84
    %p86 = scmp.ne.s32.totalorder %s77, %s78
    %p87 = scmp.eq.s32.totalorder %s25, 0
    %p88 = por %p86, %p87
    %p89 = scmp.ne.s32.totalorder %s77, %s78
    %p90 = scmp.eq.s32.totalorder %s26, 1
    %p91 = por %p89, %p90
    %p93 = scmp.ne.s32.totalorder %s78, %s92
    %p94 = scmp.eq.s32.totalorder %s26, 0
    %p95 = por %p93, %p94
    %s97 = sadd.s32 %s96, 1
    %p100 = scmp.eq.s32.totalorder %s20, 1
    %p101 = scmp.ne.s32.totalorder %s96, %s98
    %p102 = scmp.eq.s32.totalorder %s20, 0
    %p103 = por %p101, %p102
    %p104 = scmp.ne.s32.totalorder %s96, %s98
    %p105 = scmp.eq.s32.totalorder %s25, 1
    %p106 = por %p104, %p105
    %p107 = scmp.ne.s32.totalorder %s98, %s99
    %p108 = scmp.eq.s32.totalorder %s25, 0
    %p109 = por %p107, %p108
    %p110 = scmp.ne.s32.totalorder %s98, %s99
    %p111 = scmp.eq.s32.totalorder %s26, 1
    %p112 = por %p110, %p111
    %p114 = scmp.ne.s32.totalorder %s99, %s113
    %p115 = scmp.eq.s32.totalorder %s26, 0
    %p116 = por %p114, %p115
    %s118 = sadd.s32 %s117, 1
    %p121 = scmp.eq.s32.totalorder %s20, 1
    %p122 = scmp.ne.s32.totalorder %s117, %s119
    %p123 = scmp.eq.s32.totalorder %s20, 0
    %p124 = por %p122, %p123
    %p125 = scmp.ne.s32.totalorder %s117, %s119
    %p126 = scmp.eq.s32.totalorder %s25, 1
    %p127 = por %p125, %p126
    %p128 = scmp.ne.s32.totalorder %s119, %s120
    %p129 = scmp.eq.s32.totalorder %s25, 0
    %p130 = por %p128, %p129
    %p131 = scmp.ne.s32.totalorder %s119, %s120
    %p132 = scmp.eq.s32.totalorder %s26, 1
    %p133 = por %p131, %p132
    %p135 = scmp.ne.s32.totalorder %s120, %s134
    %p136 = scmp.eq.s32.totalorder %s26, 0
    %p137 = por %p135, %p136
    %s139 = sadd.s32 %s138, 1
    %p142 = scmp.eq.s32.totalorder %s20, 1
    %p143 = scmp.ne.s32.totalorder %s138, %s140
    %p144 = scmp.eq.s32.totalorder %s20, 0
    %p145 = por %p143, %p144
    %p146 = scmp.ne.s32.totalorder %s138, %s140
    %p147 = scmp.eq.s32.totalorder %s25, 1
    %p148 = por %p146, %p147
    %p149 = scmp.ne.s32.totalorder %s140, %s141
    %p150 = scmp.eq.s32.totalorder %s25, 0
    %p151 = por %p149, %p150
    %p152 = scmp.ne.s32.totalorder %s140, %s141
    %p153 = scmp.eq.s32.totalorder %s26, 1
    %p154 = por %p152, %p153
    %p156 = scmp.ne.s32.totalorder %s141, %s155
    %p157 = scmp.eq.s32.totalorder %s26, 0
    %p158 = por %p156, %p157
    %s160 = sadd.s32 %s159, 1
    %p163 = scmp.eq.s32.totalorder %s20, 1
    %p164 = scmp.ne.s32.totalorder %s159, %s161
    %p165 = scmp.eq.s32.totalorder %s20, 0
    %p166 = por %p164, %p165
    %p167 = scmp.ne.s32.totalorder %s159, %s161
    %p168 = scmp.eq.s32.totalorder %s25, 1
    %p169 = por %p167, %p168
    %p170 = scmp.ne.s32.totalorder %s161, %s162
    %p171 = scmp.eq.s32.totalorder %s25, 0
    %p172 = por %p170, %p171
    %p173 = scmp.ne.s32.totalorder %s161, %s162
    %p174 = scmp.eq.s32.totalorder %s26, 1
    %p175 = por %p173, %p174
    %p177 = scmp.ne.s32.totalorder %s162, %s176
    %p178 = scmp.eq.s32.totalorder %s26, 0
    %p179 = por %p177, %p178
    %s181 = sadd.s32 %s180, 1
    %p184 = scmp.eq.s32.totalorder %s20, 1
    %p185 = scmp.ne.s32.totalorder %s180, %s182
    %p186 = scmp.eq.s32.totalorder %s20, 0
    %p187 = por %p185, %p186
    %p188 = scmp.ne.s32.totalorder %s180, %s182
    %p189 = scmp.eq.s32.totalorder %s25, 1
    %p190 = por %p188, %p189
    %p191 = scmp.ne.s32.totalorder %s182, %s183
    %p192 = scmp.eq.s32.totalorder %s25, 0
    %p193 = por %p191, %p192
    %p194 = scmp.ne.s32.totalorder %s182, %s183
    %p195 = scmp.eq.s32.totalorder %s26, 1
    %p196 = por %p194, %p195
    %p198 = scmp.ne.s32.totalorder %s183, %s197
    %p199 = scmp.eq.s32.totalorder %s26, 0
    %p200 = por %p198, %p199
    %s202 = sadd.s32 %s201, 1
    %p205 = scmp.eq.s32.totalorder %s20, 1
    %p206 = scmp.ne.s32.totalorder %s201, %s203
    %p207 = scmp.eq.s32.totalorder %s20, 0
    %p208 = por %p206, %p207
    %p209 = scmp.ne.s32.totalorder %s201, %s203
    %p210 = scmp.eq.s32.totalorder %s25, 1
    %p211 = por %p209, %p210
    %p212 = scmp.ne.s32.totalorder %s203, %s204
    %p213 = scmp.eq.s32.totalorder %s25, 0
    %p214 = por %p212, %p213
    %p215 = scmp.ne.s32.totalorder %s203, %s204
    %p216 = scmp.eq.s32.totalorder %s26, 1
    %p217 = por %p215, %p216
    %p219 = scmp.ne.s32.totalorder %s204, %s218
    %p220 = scmp.eq.s32.totalorder %s26, 0
    %p221 = por %p219, %p220
    %s222 = ssub.s32 %s20, %s27
    %p223 = scmp.eq.s32.totalorder %s222, 0
    %s225 = sadd.s32 %s224, 1
    %s226 = scalar_select %p223, %s224, %s225
    %p229 = pneg %p223
    %p230 = scmp.eq.s32.totalorder %s20, 1
    %p231 = por %p229, %p230
    %p232 = scmp.ne.s32.totalorder %s224, %s227
    %p233 = scmp.eq.s32.totalorder %s20, 0
    %p234 = por %p232, %p233
    %p235 = scmp.ne.s32.totalorder %s224, %s227
    %p236 = scmp.eq.s32.totalorder %s25, 1
    %p237 = por %p235, %p236
    %p238 = scmp.ne.s32.totalorder %s227, %s228
    %p239 = scmp.eq.s32.totalorder %s25, 0
    %p240 = por %p238, %p239
    %p241 = scmp.ne.s32.totalorder %s227, %s228
    %p242 = scmp.eq.s32.totalorder %s26, 1
    %p243 = por %p241, %p242
    %p245 = scmp.ne.s32.totalorder %s228, %s244
    %p246 = scmp.eq.s32.totalorder %s26, 0
    %p247 = por %p245, %p246
    %s248 = ssub.s32 %s20, %s27
    %p249 = scmp.eq.s32.totalorder %s248, 0
    %s251 = sadd.s32 %s250, 1
    %s252 = scalar_select %p249, %s250, %s251
    %p255 = pneg %p249
    %p256 = scmp.eq.s32.totalorder %s20, 1
    %p257 = por %p255, %p256
    %p258 = scmp.ne.s32.totalorder %s250, %s253
    %p259 = scmp.eq.s32.totalorder %s20, 0
    %p260 = por %p258, %p259
    %p261 = scmp.ne.s32.totalorder %s250, %s253
    %p262 = scmp.eq.s32.totalorder %s25, 1
    %p263 = por %p261, %p262
    %p264 = scmp.ne.s32.totalorder %s253, %s254
    %p265 = scmp.eq.s32.totalorder %s25, 0
    %p266 = por %p264, %p265
    %p267 = scmp.ne.s32.totalorder %s253, %s254
    %p268 = scmp.eq.s32.totalorder %s26, 1
    %p269 = por %p267, %p268
    %p271 = scmp.ne.s32.totalorder %s254, %s270
    %p272 = scmp.eq.s32.totalorder %s26, 0
    %p273 = por %p271, %p272
    %s274 = ssub.s32 %s20, %s27
    %p275 = scmp.eq.s32.totalorder %s274, 0
    %s277 = sadd.s32 %s276, 1
    %s278 = scalar_select %p275, %s276, %s277
    %p281 = pneg %p275
    %p282 = scmp.eq.s32.totalorder %s20, 1
    %p283 = por %p281, %p282
    %p284 = scmp.ne.s32.totalorder %s276, %s279
    %p285 = scmp.eq.s32.totalorder %s20, 0
    %p286 = por %p284, %p285
    %p287 = scmp.ne.s32.totalorder %s276, %s279
    %p288 = scmp.eq.s32.totalorder %s25, 1
    %p289 = por %p287, %p288
    %p290 = scmp.ne.s32.totalorder %s279, %s280
    %p291 = scmp.eq.s32.totalorder %s25, 0
    %p292 = por %p290, %p291
    %p293 = scmp.ne.s32.totalorder %s279, %s280
    %p294 = scmp.eq.s32.totalorder %s26, 1
    %p295 = por %p293, %p294
    %p297 = scmp.ne.s32.totalorder %s280, %s296
    %p298 = scmp.eq.s32.totalorder %s26, 0
    %p299 = por %p297, %p298
    %s300 = ssub.s32 %s20, %s27
    %p301 = scmp.eq.s32.totalorder %s300, 0
    %s303 = sadd.s32 %s302, 1
    %s304 = scalar_select %p301, %s302, %s303
    %p307 = pneg %p301
    %p308 = scmp.eq.s32.totalorder %s20, 1
    %p309 = por %p307, %p308
    %p310 = scmp.ne.s32.totalorder %s302, %s305
    %p311 = scmp.eq.s32.totalorder %s20, 0
    %p312 = por %p310, %p311
    %p313 = scmp.ne.s32.totalorder %s302, %s305
    %p314 = scmp.eq.s32.totalorder %s25, 1
    %p315 = por %p313, %p314
    %p316 = scmp.ne.s32.totalorder %s305, %s306
    %p317 = scmp.eq.s32.totalorder %s25, 0
    %p318 = por %p316, %p317
    %p319 = scmp.ne.s32.totalorder %s305, %s306
    %p320 = scmp.eq.s32.totalorder %s26, 1
    %p321 = por %p319, %p320
    %p323 = scmp.ne.s32.totalorder %s306, %s322
    %p324 = scmp.eq.s32.totalorder %s26, 0
    %p325 = por %p323, %p324
    %s326 = ssub.s32 %s20, %s27
    %p327 = scmp.eq.s32.totalorder %s326, 0
    %s329 = sadd.s32 %s328, 1
    %s330 = scalar_select %p327, %s328, %s329
    %p333 = pneg %p327
    %p334 = scmp.eq.s32.totalorder %s20, 1
    %p335 = por %p333, %p334
    %p336 = scmp.ne.s32.totalorder %s328, %s331
    %p337 = scmp.eq.s32.totalorder %s20, 0
    %p338 = por %p336, %p337
    %p339 = scmp.ne.s32.totalorder %s328, %s331
    %p340 = scmp.eq.s32.totalorder %s25, 1
    %p341 = por %p339, %p340
    %p342 = scmp.ne.s32.totalorder %s331, %s332
    %p343 = scmp.eq.s32.totalorder %s25, 0
    %p344 = por %p342, %p343
    %p345 = scmp.ne.s32.totalorder %s331, %s332
    %p346 = scmp.eq.s32.totalorder %s26, 1
    %p347 = por %p345, %p346
    %p349 = scmp.ne.s32.totalorder %s332, %s348
    %p350 = scmp.eq.s32.totalorder %s26, 0
    %p351 = por %p349, %p350
    %p352 = scmp.le.s32.totalorder 1, %s20
    %p353 = scmp.lt.s32.totalorder %s20, 3
    %p354 = pnand %p352, %p353
    %p355 = pneg %p354
    // Predicated region
    $region9: #{encoder_forward.1} parent=5 // pred_check
      _
    $region10: #{encoder_forward.1} parent=5 // pred_check_branch
      %357 = sbr.rel (%p354) target = $region12
    $region11: #{encoder_forward.1} parent=5 // pred_region
      %s358 = ssub.s32 %s20, 1
      // Predicated region
      $region13: #{encoder_forward.1} parent=11 // pred_check
        %p359 = pneg %p67
      $region14: #{encoder_forward.1} parent=11 // pred_check_branch
        %361 = sbr.rel (%p359) target = $region16
      $region15: #{encoder_forward.1} parent=11 // pred_region
        _
      $region16: #{encoder_forward.1} parent=11 // pred_fallthru
        _
      // Predicated region
      $region17: #{encoder_forward.1} parent=11 // pred_check
        %p362 = pneg %p88
      $region18: #{encoder_forward.1} parent=11 // pred_check_branch
        %364 = sbr.rel (%p362) target = $region20
      $region19: #{encoder_forward.1} parent=11 // pred_region
        _
      $region20: #{encoder_forward.1} parent=11 // pred_fallthru
        _
      // Predicated region
      $region21: #{encoder_forward.1} parent=11 // pred_check
        %p365 = pneg %p109
      $region22: #{encoder_forward.1} parent=11 // pred_check_branch
        %367 = sbr.rel (%p365) target = $region24
      $region23: #{encoder_forward.1} parent=11 // pred_region
        _
      $region24: #{encoder_forward.1} parent=11 // pred_fallthru
        _
      // Predicated region
      $region25: #{encoder_forward.1} parent=11 // pred_check
        %p368 = pneg %p130
      $region26: #{encoder_forward.1} parent=11 // pred_check_branch
        %370 = sbr.rel (%p368) target = $region28
      $region27: #{encoder_forward.1} parent=11 // pred_region
        _
      $region28: #{encoder_forward.1} parent=11 // pred_fallthru
        _
      // Predicated region
      $region29: #{encoder_forward.1} parent=11 // pred_check
        %p371 = pneg %p151
      $region30: #{encoder_forward.1} parent=11 // pred_check_branch
        %373 = sbr.rel (%p371) target = $region32
      $region31: #{encoder_forward.1} parent=11 // pred_region
        _
      $region32: #{encoder_forward.1} parent=11 // pred_fallthru
        _
      // Predicated region
      $region33: #{encoder_forward.1} parent=11 // pred_check
        %p374 = pneg %p172
      $region34: #{encoder_forward.1} parent=11 // pred_check_branch
        %376 = sbr.rel (%p374) target = $region36
      $region35: #{encoder_forward.1} parent=11 // pred_region
        _
      $region36: #{encoder_forward.1} parent=11 // pred_fallthru
        _
      // Predicated region
      $region37: #{encoder_forward.1} parent=11 // pred_check
        %p377 = pneg %p193
      $region38: #{encoder_forward.1} parent=11 // pred_check_branch
        %379 = sbr.rel (%p377) target = $region40
      $region39: #{encoder_forward.1} parent=11 // pred_region
        _
      $region40: #{encoder_forward.1} parent=11 // pred_fallthru
        _
      // Predicated region
      $region41: #{encoder_forward.1} parent=11 // pred_check
        %p380 = pneg %p214
      $region42: #{encoder_forward.1} parent=11 // pred_check_branch
        %382 = sbr.rel (%p380) target = $region44
      $region43: #{encoder_forward.1} parent=11 // pred_region
        _
      $region44: #{encoder_forward.1} parent=11 // pred_fallthru
        _
    $region12: #{encoder_forward.1} parent=5 // pred_fallthru
      _
    %p383 = scmp.lt.s32.totalorder %s20, 2
    // Predicated region
    $region45: #{encoder_forward.1} parent=5 // pred_check
      %p384 = pneg %p383
    $region46: #{encoder_forward.1} parent=5 // pred_check_branch
      %386 = sbr.rel (%p384) target = $region48
    $region47: #{encoder_forward.1} parent=5 // pred_region
      // Predicated region
      $region49: #{encoder_forward.1} parent=47 // pred_check
        %p387 = pneg %p40
      $region50: #{encoder_forward.1} parent=47 // pred_check_branch
        %389 = sbr.rel (%p387) target = $region52
      $region51: #{encoder_forward.1} parent=47 // pred_region
        %p390 = scmp.lt.s32.totalorder %s20, 1
        %s391 = scalar_select %p390, %s20, 1
        %s392 = smul.addr %s391, 4
        %s393 = smul.addr %s392, 4
        %s394 = scalar_lea.vmem %s0, %s393
      $region52: #{encoder_forward.1} parent=47 // pred_fallthru
        _
    $region48: #{encoder_forward.1} parent=5 // pred_fallthru
      _
    %p395 = scmp.le.s32.totalorder 1, %s20
    %p396 = scmp.lt.s32.totalorder %s20, 3
    %p397 = pnand %p395, %p396
    %p398 = pneg %p397
    // Predicated region
    $region53: #{encoder_forward.1} parent=5 // pred_check
      _
    $region54: #{encoder_forward.1} parent=5 // pred_check_branch
      %400 = sbr.rel (%p397) target = $region56
    $region55: #{encoder_forward.1} parent=5 // pred_region
      %s401 = ssub.s32 %s20, 1
      %p402 = scmp.lt.s32.totalorder %s25, 1
      %s403 = scalar_select %p402, %s25, 1
      %s404 = smul.addr %s403, 4
      %s405 = smul.addr %s404, 4
      %s406 = scalar_lea.vmem %s0, %s405
      %p407 = pneg %p46
      %p408 = pneg %p43
      %p409 = pneg %p67
      %p410 = pneg %p64
      %p411 = pneg %p88
      %p412 = pneg %p85
      %p413 = pneg %p109
      %p414 = pneg %p106
      %p415 = pneg %p130
      %p416 = pneg %p127
      %p417 = pneg %p151
      %p418 = pneg %p148
      %p419 = pneg %p172
      %p420 = pneg %p169
      %p421 = pneg %p193
      %p422 = pneg %p190
      %p423 = pneg %p214
      %p424 = pneg %p211
      %p425 = pneg %p240
      %p426 = pneg %p237
      %p427 = scmp.lt.s32.totalorder %s25, 1
      %s428 = scalar_select %p427, %s25, 1
      %s429 = smul.addr %s428, 3
      %s430 = smul.addr %s429, 8
      %s431 = scalar_lea.vmem %s9, %s430
      %p432 = pneg %p266
      %p433 = pneg %p263
      %p434 = scmp.lt.s32.totalorder %s25, 1
      %s435 = scalar_select %p434, %s25, 1
      %s436 = smul.addr %s435, 3
      %s437 = smul.addr %s436, 8
      %s438 = scalar_lea.vmem %s10, %s437
      %p439 = pneg %p292
      %p440 = pneg %p289
      %p441 = scmp.lt.s32.totalorder %s25, 1
      %s442 = scalar_select %p441, %s25, 1
      %s443 = smul.addr %s442, 3
      %s444 = smul.addr %s443, 8
      %s445 = scalar_lea.vmem %s11, %s444
      %p446 = pneg %p318
      %p447 = pneg %p315
      %p448 = scmp.lt.s32.totalorder %s25, 1
      %s449 = scalar_select %p448, %s25, 1
      %s450 = smul.addr %s449, 3
      %s451 = smul.addr %s450, 8
      %s452 = scalar_lea.vmem %s12, %s451
      %p453 = pneg %p344
      %p454 = pneg %p341
      %p455 = scmp.lt.s32.totalorder %s25, 1
      %s456 = scalar_select %p455, %s25, 1
      %s457 = smul.addr %s456, 6
      %s458 = smul.addr %s457, 8
      %s459 = scalar_lea.vmem %s13, %s458
      %p460 = scmp.lt.s32.totalorder %s25, 1
      %s461 = scalar_select %p460, %s25, 1
      %s462 = smul.addr %s461, 4
      %s463 = smul.addr %s462, 4
      %s464 = scalar_lea.vmem %s0, %s463
      %p465 = scmp.lt.s32.totalorder %s25, 1
      %s466 = scalar_select %p465, %s25, 1
      %s467 = smul.addr %s466, 3
      %s468 = smul.addr %s467, 8
      %s469 = scalar_lea.vmem %s9, %s468
      %p470 = scmp.lt.s32.totalorder %s25, 1
      %s471 = scalar_select %p470, %s25, 1
      %s472 = smul.addr %s471, 3
      %s473 = smul.addr %s472, 8
      %s474 = scalar_lea.vmem %s10, %s473
      %p475 = scmp.lt.s32.totalorder %s25, 1
      %s476 = scalar_select %p475, %s25, 1
      %s477 = smul.addr %s476, 3
      %s478 = smul.addr %s477, 8
      %s479 = scalar_lea.vmem %s11, %s478
      %p480 = scmp.lt.s32.totalorder %s25, 1
      %s481 = scalar_select %p480, %s25, 1
      %s482 = smul.addr %s481, 3
      %s483 = smul.addr %s482, 8
      %s484 = scalar_lea.vmem %s12, %s483
      %p485 = scmp.lt.s32.totalorder %s25, 1
      %s486 = scalar_select %p485, %s25, 1
      %s487 = smul.addr %s486, 6
      %s488 = smul.addr %s487, 8
      %s489 = scalar_lea.vmem %s13, %s488
      %v490 = vlaneseq
      %v491 = vand.u32 %v490, 127
      %v492 = vadd.s32 %v491, 128
      %v493 = vadd.s32 %v491, 256
      %vm494 = vcmp.lt.s32.totalorder %v491, 0
      %v495 = vsub.s32 0, %v491
      %v496 = vsel %vm494, %v495, %v491
      %v497 = vmul.u32.u64.compose %v496, 2863311531
      %v498 = vextract.low.u32 %v497
      %v499 = vextract.high.u32 %v497
      %v500 = vshrl.u32 %v499, 4
      %v501 = vmul.u32 %v500, 24
      %v502 = vsub.s32 %v496, %v501
      %v503 = vsub.s32 0, %v502
      %v504 = vsel %vm494, %v503, %v502
      %vm505 = vcmp.lt.s32.totalorder %v492, 0
      %v506 = vsub.s32 0, %v492
      %v507 = vsel %vm505, %v506, %v492
      %v508 = vmul.u32.u64.compose %v507, 2863311531
      %v509 = vextract.low.u32 %v508
      %v510 = vextract.high.u32 %v508
      %v511 = vshrl.u32 %v510, 4
      %v512 = vmul.u32 %v511, 24
      %v513 = vsub.s32 %v507, %v512
      %v514 = vsub.s32 0, %v513
      %v515 = vsel %vm505, %v514, %v513
      %vm516 = vcmp.lt.s32.totalorder %v493, 0
      %v517 = vsub.s32 0, %v493
      %v518 = vsel %vm516, %v517, %v493
      %v519 = vmul.u32.u64.compose %v518, 2863311531
      %v520 = vextract.low.u32 %v519
      %v521 = vextract.high.u32 %v519
      %v522 = vshrl.u32 %v521, 4
      %v523 = vmul.u32 %v522, 24
      %v524 = vsub.s32 %v518, %v523
      %v525 = vsub.s32 0, %v524
      %v526 = vsel %vm516, %v525, %v524
      %vm527 = vcmp.ne.s32.totalorder %v504, 0
      %vm528 = vcmp.ne.s32.totalorder %v515, 0
      %vm529 = vcmp.ne.s32.totalorder %v526, 0
      %vm530 = vcmp.lt.s32.totalorder %v504, 0
      %vm531 = vcmp.lt.s32.totalorder %v515, 0
      %vm532 = vcmp.lt.s32.totalorder %v526, 0
      %vm533 = vmand %vm530, %vm527
      %vm534 = vmand %vm531, %vm528
      %vm535 = vmand %vm532, %vm529
      %v536 = vadd.s32 %v504, 24
      %v537 = vadd.s32 %v515, 24
      %v538 = vadd.s32 %v526, 24
      %v539 = vsel %vm533, %v536, %v504
      %v540 = vsel %vm534, %v537, %v515
      %v541 = vsel %vm535, %v538, %v526
      %vm542 = vcmp.lt.s32.totalorder %v539, 16
      %vm543 = vcmp.lt.s32.totalorder %v540, 16
      %vm544 = vcmp.lt.s32.totalorder %v541, 16
      %v545 = vld [vmem:[%s1] sm:$0xff]
      %v546 = vld [vmem:[%s464] sm:$0xff]
      %v547 = vld [vmem:[%s464 + $0x8] sm:$0xf]
      %v549 = vcombine.high %v546, %v546
      %551 = vst [vmem:[#allocation2] sm:$0xf] %v546
      %552 = vst [vmem:[#allocation2 + $0x8] sm:$0xf] %v549
      %553 = vst [vmem:[#allocation2 + $0x10] sm:$0xf] %v547
      %v554 = vld [vmem:[%s464] sm:$0xff]
      %v555 = vld [vmem:[%s464 + $0x8] sm:$0xff]
      %v558 = vcombine.low %v554, %v554
      %v559 = vcombine.low %v555, %v555
      %560 = vrot.lane.b32.xlu0 %v558, 127
      %v561 = vpop.permute.xlu0 %560
      %562 = vrot.lane.b32.xlu0 %v554, 127
      %v563 = vpop.permute.xlu0 %562
      %564 = vrot.lane.b32.xlu0 %v559, 127
      %v565 = vpop.permute.xlu0 %564
      %566 = vrot.lane.b32.xlu0 %v555, 127
      %v567 = vpop.permute.xlu0 %566
      %vm568 = vcmask 1039360
      %v569 = vsel %vm568, %v561, %v563
      %v570 = vsel %vm568, %v563, %v565
      %v571 = vsel %vm568, %v565, %v567
      %575 = vst [vmem:[#allocation2] sm:$0xf0] %v569
      %576 = vst [vmem:[#allocation2 + $0x8] sm:$0xf0] %v570
      %577 = vst [vmem:[#allocation2 + $0x10] sm:$0xf0] %v571
      %v578 = vld [vmem:[%s464] sm:$0xff]
      %v579 = vld [vmem:[%s464 + $0x8] sm:$0xff]
      %v582 = vcombine.high %v578, %v578
      %v583 = vcombine.high %v579, %v579
      %584 = vrot.lane.b32.xlu0 %v578, 126
      %v585 = vpop.permute.xlu0 %584
      %586 = vrot.lane.b32.xlu0 %v582, 126
      %v587 = vpop.permute.xlu0 %586
      %588 = vrot.lane.b32.xlu0 %v579, 126
      %v589 = vpop.permute.xlu0 %588
      %590 = vrot.lane.b32.xlu0 %v583, 126
      %v591 = vpop.permute.xlu0 %590
      %vm592 = vcmask 1031168
      %v593 = vsel %vm592, %v585, %v587
      %v594 = vsel %vm592, %v587, %v589
      %v595 = vsel %vm592, %v589, %v591
      %599 = vst [vmem:[#allocation2 + $0x18] sm:$0xf] %v593
      %600 = vst [vmem:[#allocation2 + $0x20] sm:$0xf] %v594
      %601 = vst [vmem:[#allocation2 + $0x28] sm:$0xf] %v595
      %v602 = vld [vmem:[%s464] sm:$0xff]
      %v603 = vld [vmem:[%s464 + $0x8] sm:$0xff]
      %v606 = vcombine.low %v602, %v602
      %v607 = vcombine.low %v603, %v603
      %608 = vrot.lane.b32.xlu0 %v606, 104
      %v609 = vpop.permute.xlu0 %608
      %610 = vrot.lane.b32.xlu0 %v602, 104
      %v611 = vpop.permute.xlu0 %610
      %612 = vrot.lane.b32.xlu0 %v607, 104
      %v613 = vpop.permute.xlu0 %612
      %614 = vrot.lane.b32.xlu0 %v603, 104
      %v615 = vpop.permute.xlu0 %614
      %vm616 = vcmask 850944
      %v617 = vsel %vm616, %v609, %v611
      %v618 = vsel %vm616, %v611, %v613
      %v619 = vsel %vm616, %v613, %v615
      %623 = vst [vmem:[#allocation2 + $0x18] sm:$0xf0] %v617
      %624 = vst [vmem:[#allocation2 + $0x20] sm:$0xf0] %v618
      %625 = vst [vmem:[#allocation2 + $0x28] sm:$0xf0] %v619
      %v626 = vld [vmem:[%s464] sm:$0xff]
      %v627 = vld [vmem:[%s464 + $0x8] sm:$0xff]
      %v630 = vcombine.high %v626, %v626
      %v631 = vcombine.high %v627, %v627
      %632 = vrot.lane.b32.xlu0 %v626, 103
      %v633 = vpop.permute.xlu0 %632
      %634 = vrot.lane.b32.xlu0 %v630, 103
      %v635 = vpop.permute.xlu0 %634
      %636 = vrot.lane.b32.xlu0 %v627, 103
      %v637 = vpop.permute.xlu0 %636
      %638 = vrot.lane.b32.xlu0 %v631, 103
      %v639 = vpop.permute.xlu0 %638
      %vm640 = vcmask 842752
      %v641 = vsel %vm640, %v633, %v635
      %v642 = vsel %vm640, %v635, %v637
      %v643 = vsel %vm640, %v637, %v639
      %647 = vst [vmem:[#allocation2 + $0x30] sm:$0xf] %v641
      %648 = vst [vmem:[#allocation2 + $0x38] sm:$0xf] %v642
      %649 = vst [vmem:[#allocation2 + $0x40] sm:$0xf] %v643
      %v650 = vld [vmem:[%s464] sm:$0xff]
      %v651 = vld [vmem:[%s464 + $0x8] sm:$0xff]
      %v654 = vcombine.low %v650, %v650
      %v655 = vcombine.low %v651, %v651
      %656 = vrot.lane.b32.xlu0 %v654, 102
      %v657 = vpop.permute.xlu0 %656
      %658 = vrot.lane.b32.xlu0 %v650, 102
      %v659 = vpop.permute.xlu0 %658
      %660 = vrot.lane.b32.xlu0 %v655, 102
      %v661 = vpop.permute.xlu0 %660
      %662 = vrot.lane.b32.xlu0 %v651, 102
      %v663 = vpop.permute.xlu0 %662
      %vm664 = vcmask 834560
      %v665 = vsel %vm664, %v657, %v659
      %v666 = vsel %vm664, %v659, %v661
      %v667 = vsel %vm664, %v661, %v663
      %671 = vst [vmem:[#allocation2 + $0x30] sm:$0xf0] %v665
      %672 = vst [vmem:[#allocation2 + $0x38] sm:$0xf0] %v666
      %673 = vst [vmem:[#allocation2 + $0x40] sm:$0xf0] %v667
      %v674 = vld [vmem:[%s464] sm:$0xff]
      %v675 = vld [vmem:[%s464 + $0x8] sm:$0xff]
      %v678 = vcombine.high %v674, %v674
      %v679 = vcombine.high %v675, %v675
      %680 = vrot.lane.b32.xlu0 %v674, 80
      %v681 = vpop.permute.xlu0 %680
      %682 = vrot.lane.b32.xlu0 %v678, 80
      %v683 = vpop.permute.xlu0 %682
      %684 = vrot.lane.b32.xlu0 %v675, 80
      %v685 = vpop.permute.xlu0 %684
      %686 = vrot.lane.b32.xlu0 %v679, 80
      %v687 = vpop.permute.xlu0 %686
      %vm688 = vcmask 654336
      %v689 = vsel %vm688, %v681, %v683
      %v690 = vsel %vm688, %v683, %v685
      %v691 = vsel %vm688, %v685, %v687
      %695 = vst [vmem:[#allocation2 + $0x48] sm:$0xf] %v689
      %696 = vst [vmem:[#allocation2 + $0x50] sm:$0xf] %v690
      %697 = vst [vmem:[#allocation2 + $0x58] sm:$0xf] %v691
      %v698 = vld [vmem:[%s464] sm:$0xff]
      %v699 = vld [vmem:[%s464 + $0x8] sm:$0xff]
      %v702 = vcombine.low %v698, %v698
      %v703 = vcombine.low %v699, %v699
      %704 = vrot.lane.b32.xlu0 %v702, 79
      %v705 = vpop.permute.xlu0 %704
      %706 = vrot.lane.b32.xlu0 %v698, 79
      %v707 = vpop.permute.xlu0 %706
      %708 = vrot.lane.b32.xlu0 %v703, 79
      %v709 = vpop.permute.xlu0 %708
      %710 = vrot.lane.b32.xlu0 %v699, 79
      %v711 = vpop.permute.xlu0 %710
      %vm712 = vcmask 646144
      %v713 = vsel %vm712, %v705, %v707
      %v714 = vsel %vm712, %v707, %v709
      %v715 = vsel %vm712, %v709, %v711
      %719 = vst [vmem:[#allocation2 + $0x48] sm:$0xf0] %v713
      %720 = vst [vmem:[#allocation2 + $0x50] sm:$0xf0] %v714
      %721 = vst [vmem:[#allocation2 + $0x58] sm:$0xf0] %v715
      %v722 = vld [vmem:[%s464] sm:$0xff]
      %v723 = vld [vmem:[%s464 + $0x8] sm:$0xff]
      %v726 = vcombine.high %v722, %v722
      %v727 = vcombine.high %v723, %v723
      %728 = vrot.lane.b32.xlu0 %v722, 78
      %v729 = vpop.permute.xlu0 %728
      %730 = vrot.lane.b32.xlu0 %v726, 78
      %v731 = vpop.permute.xlu0 %730
      %732 = vrot.lane.b32.xlu0 %v723, 78
      %v733 = vpop.permute.xlu0 %732
      %734 = vrot.lane.b32.xlu0 %v727, 78
      %v735 = vpop.permute.xlu0 %734
      %vm736 = vcmask 637952
      %v737 = vsel %vm736, %v729, %v731
      %v738 = vsel %vm736, %v731, %v733
      %v739 = vsel %vm736, %v733, %v735
      %743 = vst [vmem:[#allocation2 + $0x60] sm:$0xf] %v737
      %744 = vst [vmem:[#allocation2 + $0x68] sm:$0xf] %v738
      %745 = vst [vmem:[#allocation2 + $0x70] sm:$0xf] %v739
      %v746 = vld [vmem:[#allocation2] sm:$0xff]
      %v747 = vld [vmem:[#allocation2 + $0x8] sm:$0xff]
      %v748 = vld [vmem:[#allocation2 + $0x10] sm:$0xff]
      %v749 = vld [vmem:[#allocation2 + $0x18] sm:$0xff]
      %v750 = vld [vmem:[#allocation2 + $0x20] sm:$0xff]
      %v751 = vld [vmem:[#allocation2 + $0x28] sm:$0xff]
      %v752 = vld [vmem:[#allocation2 + $0x30] sm:$0xff]
      %v753 = vld [vmem:[#allocation2 + $0x38] sm:$0xff]
      %v754 = vld [vmem:[#allocation2 + $0x40] sm:$0xff]
      %v755 = vld [vmem:[#allocation2 + $0x48] sm:$0xff]
      %v756 = vld [vmem:[#allocation2 + $0x50] sm:$0xff]
      %v757 = vld [vmem:[#allocation2 + $0x58] sm:$0xff]
      %v758 = vld [vmem:[#allocation2 + $0x60] sm:$0xf]
      %v759 = vld [vmem:[#allocation2 + $0x68] sm:$0xf]
      %v760 = vld [vmem:[#allocation2 + $0x70] sm:$0xf]
      %v761 = vld [vmem:[%s2] sm:$0xff]
      %763 = vset.pattern.permute.xlu0 0
      %764 = vperm.xlu0 %763, %v761
      %v765 = vpop.permute.xlu0 %764
      %vm767 = vcmask 293888
      %v769 = vsel %vm767, %v545, 0
      %vm771 = vcmask 1043456
      %v773 = vsel %vm771, %v758, 0
      %v776 = vsel %vm771, %v759, 0
      %v779 = vsel %vm771, %v760, 0
      %781 = vmatprep.subr.mxu0 0.0
      %782 = vmatpush1.msra.mxu0 0.0
      %783 = vmatprep.subr.mxu0 0.0
      %784 = vmatpush1.msra.mxu0 0.0
      %785 = vmatprep.subr.mxu0 0.0
      %786 = vmatpush1.msra.mxu0 0.0
      %787 = vmatprep.subr.mxu0 0.0
      %788 = vmatpush1.msra.mxu0 0.0
      %789 = vmatprep.subr.mxu0 0.0
      %790 = vmatpush1.msra.mxu0 0.0
      %791 = vmatprep.subr.mxu0 0.0
      %792 = vmatpush1.msra.mxu0 0.0
      %793 = vmatprep.subr.mxu0 0.0
      %794 = vmatpush1.msra.mxu0 0.0
      %795 = vmatprep.subr.mxu0 0.0
      %796 = vmatpush1.msra.mxu0 0.0
      %797 = vmatprep.subr.mxu0 0.0
      %798 = vmatpush1.msra.mxu0 0.0
      %799 = vmatprep.subr.mxu0 0.0
      %800 = vmatpush1.msra.mxu0 0.0
      %801 = vmatprep.subr.mxu0 0.0
      %802 = vmatpush1.msra.mxu0 0.0
      %803 = vmatprep.subr.mxu0 %v776
      %804 = vmatpush1.msra.mxu0 %v773
      %805 = vmatprep.subr.mxu0 %v756
      %806 = vmatpush1.msra.mxu0 %v755
      %807 = vmatprep.subr.mxu0 %v753
      %808 = vmatpush1.msra.mxu0 %v752
      %809 = vmatprep.subr.mxu0 %v750
      %810 = vmatpush1.msra.mxu0 %v749
      %811 = vmatprep.subr.mxu0 %v747
      %812 = vmatpush1.msra.mxu0 %v746
      %813 = vmatprep.subr.mxu0 0.0
      %814 = vmatpush2.msra.mxu0 0.0
      %815 = vmatprep.subr.mxu0 0.0
      %816 = vmatpush2.msra.mxu0 0.0
      %817 = vmatprep.subr.mxu0 0.0
      %818 = vmatpush2.msra.mxu0 0.0
      %819 = vmatprep.subr.mxu0 0.0
      %820 = vmatpush2.msra.mxu0 0.0
      %821 = vmatprep.subr.mxu0 0.0
      %822 = vmatpush2.msra.mxu0 0.0
      %823 = vmatprep.subr.mxu0 0.0
      %824 = vmatpush2.msra.mxu0 0.0
      %825 = vmatprep.subr.mxu0 0.0
      %826 = vmatpush2.msra.mxu0 0.0
      %827 = vmatprep.subr.mxu0 0.0
      %828 = vmatpush2.msra.mxu0 0.0
      %829 = vmatprep.subr.mxu0 0.0
      %830 = vmatpush2.msra.mxu0 0.0
      %831 = vmatprep.subr.mxu0 0.0
      %832 = vmatpush2.msra.mxu0 0.0
      %833 = vmatprep.subr.mxu0 0.0
      %834 = vmatpush2.msra.mxu0 0.0
      %835 = vmatprep.subr.mxu0 0.0
      %836 = vmatpush2.msra.mxu0 0.0
      %837 = vmatprep.subr.mxu0 0.0
      %838 = vmatpush2.msra.mxu0 0.0
      %839 = vmatprep.subr.mxu0 0.0
      %840 = vmatpush2.msra.mxu0 0.0
      %841 = vmatprep.subr.mxu0 0.0
      %842 = vmatpush2.msra.mxu0 0.0
      %843 = vmatprep.subr.mxu0 0.0
      %844 = vmatpush2.msra.mxu0 0.0
      %845 = vmatprep.mubr.f32.mxu0 0.0
      %846 = vmatmul.mubr.f32.gmra.mxu0 %v769
      %v847 = vpop.f32.mrf.mxu0
      %v848 = vadd.f32 %v765, %v847
      %v849 = vpop.f32.mrf.mxu0
      %v850 = vadd.f32 %v765, %v849
      %851 = vdwg.mxu0
      %852 = vmatprep.subr.mxu0 0.0
      %853 = vmatpush1.msra.mxu0 0.0
      %854 = vmatprep.subr.mxu0 0.0
      %855 = vmatpush1.msra.mxu0 0.0
      %856 = vmatprep.subr.mxu0 0.0
      %857 = vmatpush1.msra.mxu0 0.0
      %858 = vmatprep.subr.mxu0 0.0
      %859 = vmatpush1.msra.mxu0 0.0
      %860 = vmatprep.subr.mxu0 0.0
      %861 = vmatpush1.msra.mxu0 0.0
      %862 = vmatprep.subr.mxu0 0.0
      %863 = vmatpush1.msra.mxu0 0.0
      %864 = vmatprep.subr.mxu0 0.0
      %865 = vmatpush1.msra.mxu0 0.0
      %866 = vmatprep.subr.mxu0 0.0
      %867 = vmatpush1.msra.mxu0 0.0
      %868 = vmatprep.subr.mxu0 0.0
      %869 = vmatpush1.msra.mxu0 0.0
      %870 = vmatprep.subr.mxu0 0.0
      %871 = vmatpush1.msra.mxu0 0.0
      %872 = vmatprep.subr.mxu0 0.0
      %873 = vmatpush1.msra.mxu0 0.0
      %874 = vmatprep.subr.mxu0 0.0
      %875 = vmatpush1.msra.mxu0 %v779
      %876 = vmatprep.subr.mxu0 0.0
      %877 = vmatpush1.msra.mxu0 %v757
      %878 = vmatprep.subr.mxu0 0.0
      %879 = vmatpush1.msra.mxu0 %v754
      %880 = vmatprep.subr.mxu0 0.0
      %881 = vmatpush1.msra.mxu0 %v751
      %882 = vmatprep.subr.mxu0 0.0
      %883 = vmatpush1.msra.mxu0 %v748
      %884 = vmatprep.subr.mxu0 0.0
      %885 = vmatpush2.msra.mxu0 0.0
      %886 = vmatprep.subr.mxu0 0.0
      %887 = vmatpush2.msra.mxu0 0.0
      %888 = vmatprep.subr.mxu0 0.0
      %889 = vmatpush2.msra.mxu0 0.0
      %890 = vmatprep.subr.mxu0 0.0
      %891 = vmatpush2.msra.mxu0 0.0
      %892 = vmatprep.subr.mxu0 0.0
      %893 = vmatpush2.msra.mxu0 0.0
      %894 = vmatprep.subr.mxu0 0.0
      %895 = vmatpush2.msra.mxu0 0.0
      %896 = vmatprep.subr.mxu0 0.0
      %897 = vmatpush2.msra.mxu0 0.0
      %898 = vmatprep.subr.mxu0 0.0
      %899 = vmatpush2.msra.mxu0 0.0
      %900 = vmatprep.subr.mxu0 0.0
      %901 = vmatpush2.msra.mxu0 0.0
      %902 = vmatprep.subr.mxu0 0.0
      %903 = vmatpush2.msra.mxu0 0.0
      %904 = vmatprep.subr.mxu0 0.0
      %905 = vmatpush2.msra.mxu0 0.0
      %906 = vmatprep.subr.mxu0 0.0
      %907 = vmatpush2.msra.mxu0 0.0
      %908 = vmatprep.subr.mxu0 0.0
      %909 = vmatpush2.msra.mxu0 0.0
      %910 = vmatprep.subr.mxu0 0.0
      %911 = vmatpush2.msra.mxu0 0.0
      %912 = vmatprep.subr.mxu0 0.0
      %913 = vmatpush2.msra.mxu0 0.0
      %914 = vmatprep.subr.mxu0 0.0
      %915 = vmatpush2.msra.mxu0 0.0
      %916 = vmatprep.mubr.f32.mxu0 0.0
      %917 = vmatmul.mubr.f32.gmra.mxu0 %v769
      %v918 = vpop.f32.mrf.mxu0
      %v919 = vadd.f32 %v765, %v918
      %v920 = vpop.f32.mrf.mxu0
      %921 = vdwg.mxu0
      %v922 = vld [vmem:[%s3] sm:$0xff]
      %924 = vset.pattern.permute.xlu0 0
      %925 = vperm.xlu0 %924, %v922
      %v926 = vpop.permute.xlu0 %925
      %v928 = vmul.f32 %v848, %v926
      %v929 = vmul.f32 %v850, %v926
      %v930 = vmul.f32 %v919, %v926
      %v931 = vld [vmem:[%s4] sm:$0xff]
      %933 = vset.pattern.permute.xlu0 0
      %934 = vperm.xlu0 %933, %v931
      %v935 = vpop.permute.xlu0 %934
      %v937 = vadd.f32 %v928, %v935
      %v938 = vadd.f32 %v929, %v935
      %v939 = vadd.f32 %v930, %v935
      %v940 = vmax.f32 %v937, 0.0
      %v941 = vmax.f32 %v938, 0.0
      %v942 = vmax.f32 %v939, 0.0
      %943 = vst [vmem:[%s469] sm:$0xff] %v848
      %944 = vst [vmem:[%s469 + $0x8] sm:$0xff] %v850
      %945 = vst [vmem:[%s469 + $0x10] sm:$0xff] %v919
      %946 = vst [vmem:[%s474] sm:$0xff] %v937
      %947 = vst [vmem:[%s474 + $0x8] sm:$0xff] %v938
      %948 = vst [vmem:[%s474 + $0x10] sm:$0xff] %v939
      %949 = vst [vmem:[%s479] sm:$0xff] %v940
      %950 = vst [vmem:[%s479 + $0x8] sm:$0xff] %v941
      %951 = vst [vmem:[%s479 + $0x10] sm:$0xff] %v942
      %952 = vst [vmem:[#allocation3] sm:$0xff] 0.0
      %953 = vst [vmem:[#allocation3 + $0x8] sm:$0xff] 0.0
      %954 = vst [vmem:[#allocation3 + $0x10] sm:$0xff] 0.0
      %vm955 = vcmask 588800
      %956 = vst.msk [vmem:[#allocation3 + $0x18] sm:$0xff] %vm955, 0.0
      %v957 = vsel %vm542, 1, 0
      %v958 = vsel %vm543, 1, 0
      %v959 = vsel %vm544, 1, 0
      %vm960 = vcmp.eq.s32.totalorder %v957, 1
      %vm961 = vcmp.eq.s32.totalorder %v958, 1
      %vm962 = vcmp.eq.s32.totalorder %v959, 1
      %v963 = vsel %vm960, %v940, 0.0
      %v964 = vsel %vm961, %v941, 0.0
      %v965 = vsel %vm962, %v942, 0.0
      %969 = vrot.lane.b32.xlu0 %v963, 25
      %v970 = vpop.permute.xlu0 %969
      %971 = vrot.lane.b32.xlu0 %v964, 25
      %v972 = vpop.permute.xlu0 %971
      %973 = vrot.lane.b32.xlu0 %v965, 25
      %v974 = vpop.permute.xlu0 %973
      %vm975 = vcmask 203776
      %v976 = vsel %vm975, %v970, %v972
      %v977 = vsel %vm975, %v972, %v974
      %vm982 = vcmask 1047752
      %983 = vst.msk [vmem:[#allocation3] sm:$0xff] %vm982, %v970
      %984 = vst [vmem:[#allocation3 + $0x8] sm:$0xff] %v976
      %985 = vst [vmem:[#allocation3 + $0x10] sm:$0xff] %v977
      %986 = vst.msk [vmem:[#allocation3 + $0x18] sm:$0xff] %vm975, %v974
      %v987 = vld [vmem:[#allocation3] sm:$0xff]
      %v988 = vld [vmem:[#allocation3 + $0x8] sm:$0xff]
      %v989 = vld [vmem:[#allocation3 + $0x10] sm:$0xff]
      %990 = vst [vmem:[#allocation2] sm:$0xff] %v987
      %991 = vst [vmem:[#allocation2 + $0x8] sm:$0xff] %v988
      %992 = vst [vmem:[#allocation2 + $0x10] sm:$0xff] %v989
      %v993 = vld [vmem:[#allocation3] sm:$0xff]
      %v994 = vld [vmem:[#allocation3 + $0x8] sm:$0xff]
      %v995 = vld [vmem:[#allocation3 + $0x10] sm:$0xff]
      %v996 = vld [vmem:[#allocation3 + $0x18] sm:$0xff]
      %1001 = vrot.lane.b32.xlu0 %v993, 127
      %v1002 = vpop.permute.xlu0 %1001
      %1003 = vrot.lane.b32.xlu0 %v994, 127
      %v1004 = vpop.permute.xlu0 %1003
      %1005 = vrot.lane.b32.xlu0 %v995, 127
      %v1006 = vpop.permute.xlu0 %1005
      %1007 = vrot.lane.b32.xlu0 %v996, 127
      %v1008 = vpop.permute.xlu0 %1007
      %v1009 = vsel %vm568, %v1002, %v1004
      %v1010 = vsel %vm568, %v1004, %v1006
      %v1011 = vsel %vm568, %v1006, %v1008
      %1015 = vst [vmem:[#allocation2 + $0x18] sm:$0xff] %v1009
      %1016 = vst [vmem:[#allocation2 + $0x20] sm:$0xff] %v1010
      %1017 = vst [vmem:[#allocation2 + $0x28] sm:$0xff] %v1011
      %v1018 = vld [vmem:[#allocation3] sm:$0xff]
      %v1019 = vld [vmem:[#allocation3 + $0x8] sm:$0xff]
      %v1020 = vld [vmem:[#allocation3 + $0x10] sm:$0xff]
      %v1021 = vld [vmem:[#allocation3 + $0x18] sm:$0xff]
      %1026 = vrot.lane.b32.xlu0 %v1018, 126
      %v1027 = vpop.permute.xlu0 %1026
      %1028 = vrot.lane.b32.xlu0 %v1019, 126
      %v1029 = vpop.permute.xlu0 %1028
      %1030 = vrot.lane.b32.xlu0 %v1020, 126
      %v1031 = vpop.permute.xlu0 %1030
      %1032 = vrot.lane.b32.xlu0 %v1021, 126
      %v1033 = vpop.permute.xlu0 %1032
      %v1034 = vsel %vm592, %v1027, %v1029
      %v1035 = vsel %vm592, %v1029, %v1031
      %v1036 = vsel %vm592, %v1031, %v1033
      %1040 = vst [vmem:[#allocation2 + $0x30] sm:$0xff] %v1034
      %1041 = vst [vmem:[#allocation2 + $0x38] sm:$0xff] %v1035
      %1042 = vst [vmem:[#allocation2 + $0x40] sm:$0xff] %v1036
      %v1043 = vld [vmem:[#allocation3] sm:$0xff]
      %v1044 = vld [vmem:[#allocation3 + $0x8] sm:$0xff]
      %v1045 = vld [vmem:[#allocation3 + $0x10] sm:$0xff]
      %v1046 = vld [vmem:[#allocation3 + $0x18] sm:$0xff]
      %1051 = vrot.lane.b32.xlu0 %v1043, 104
      %v1052 = vpop.permute.xlu0 %1051
      %1053 = vrot.lane.b32.xlu0 %v1044, 104
      %v1054 = vpop.permute.xlu0 %1053
      %1055 = vrot.lane.b32.xlu0 %v1045, 104
      %v1056 = vpop.permute.xlu0 %1055
      %1057 = vrot.lane.b32.xlu0 %v1046, 104
      %v1058 = vpop.permute.xlu0 %1057
      %v1059 = vsel %vm616, %v1052, %v1054
      %v1060 = vsel %vm616, %v1054, %v1056
      %v1061 = vsel %vm616, %v1056, %v1058
      %1065 = vst [vmem:[#allocation2 + $0x48] sm:$0xff] %v1059
      %1066 = vst [vmem:[#allocation2 + $0x50] sm:$0xff] %v1060
      %1067 = vst [vmem:[#allocation2 + $0x58] sm:$0xff] %v1061
      %v1068 = vld [vmem:[#allocation3] sm:$0xff]
      %v1069 = vld [vmem:[#allocation3 + $0x8] sm:$0xff]
      %v1070 = vld [vmem:[#allocation3 + $0x10] sm:$0xff]
      %v1071 = vld [vmem:[#allocation3 + $0x18] sm:$0xff]
      %1076 = vrot.lane.b32.xlu0 %v1068, 103
      %v1077 = vpop.permute.xlu0 %1076
      %1078 = vrot.lane.b32.xlu0 %v1069, 103
      %v1079 = vpop.permute.xlu0 %1078
      %1080 = vrot.lane.b32.xlu0 %v1070, 103
      %v1081 = vpop.permute.xlu0 %1080
      %1082 = vrot.lane.b32.xlu0 %v1071, 103
      %v1083 = vpop.permute.xlu0 %1082
      %v1084 = vsel %vm640, %v1077, %v1079
      %v1085 = vsel %vm640, %v1079, %v1081
      %v1086 = vsel %vm640, %v1081, %v1083
      %1090 = vst [vmem:[#allocation2 + $0x60] sm:$0xff] %v1084
      %1091 = vst [vmem:[#allocation2 + $0x68] sm:$0xff] %v1085
      %1092 = vst [vmem:[#allocation2 + $0x70] sm:$0xff] %v1086
      %v1093 = vld [vmem:[#allocation3] sm:$0xff]
      %v1094 = vld [vmem:[#allocation3 + $0x8] sm:$0xff]
      %v1095 = vld [vmem:[#allocation3 + $0x10] sm:$0xff]
      %v1096 = vld [vmem:[#allocation3 + $0x18] sm:$0xff]
      %1101 = vrot.lane.b32.xlu0 %v1093, 102
      %v1102 = vpop.permute.xlu0 %1101
      %1103 = vrot.lane.b32.xlu0 %v1094, 102
      %v1104 = vpop.permute.xlu0 %1103
      %1105 = vrot.lane.b32.xlu0 %v1095, 102
      %v1106 = vpop.permute.xlu0 %1105
      %1107 = vrot.lane.b32.xlu0 %v1096, 102
      %v1108 = vpop.permute.xlu0 %1107
      %v1109 = vsel %vm664, %v1102, %v1104
      %v1110 = vsel %vm664, %v1104, %v1106
      %v1111 = vsel %vm664, %v1106, %v1108
      %1115 = vst [vmem:[#allocation2 + $0x78] sm:$0xff] %v1109
      %1116 = vst [vmem:[#allocation2 + $0x80] sm:$0xff] %v1110
      %1117 = vst [vmem:[#allocation2 + $0x88] sm:$0xff] %v1111
      %v1118 = vld [vmem:[#allocation3] sm:$0xff]
      %v1119 = vld [vmem:[#allocation3 + $0x8] sm:$0xff]
      %v1120 = vld [vmem:[#allocation3 + $0x10] sm:$0xff]
      %v1121 = vld [vmem:[#allocation3 + $0x18] sm:$0xff]
      %1126 = vrot.lane.b32.xlu0 %v1118, 80
      %v1127 = vpop.permute.xlu0 %1126
      %1128 = vrot.lane.b32.xlu0 %v1119, 80
      %v1129 = vpop.permute.xlu0 %1128
      %1130 = vrot.lane.b32.xlu0 %v1120, 80
      %v1131 = vpop.permute.xlu0 %1130
      %1132 = vrot.lane.b32.xlu0 %v1121, 80
      %v1133 = vpop.permute.xlu0 %1132
      %v1134 = vsel %vm688, %v1127, %v1129
      %v1135 = vsel %vm688, %v1129, %v1131
      %v1136 = vsel %vm688, %v1131, %v1133
      %1140 = vst [vmem:[#allocation2 + $0x90] sm:$0xff] %v1134
      %1141 = vst [vmem:[#allocation2 + $0x98] sm:$0xff] %v1135
      %1142 = vst [vmem:[#allocation2 + $0xa0] sm:$0xff] %v1136
      %v1143 = vld [vmem:[#allocation3] sm:$0xff]
      %v1144 = vld [vmem:[#allocation3 + $0x8] sm:$0xff]
      %v1145 = vld [vmem:[#allocation3 + $0x10] sm:$0xff]
      %v1146 = vld [vmem:[#allocation3 + $0x18] sm:$0xff]
      %1151 = vrot.lane.b32.xlu0 %v1143, 79
      %v1152 = vpop.permute.xlu0 %1151
      %1153 = vrot.lane.b32.xlu0 %v1144, 79
      %v1154 = vpop.permute.xlu0 %1153
      %1155 = vrot.lane.b32.xlu0 %v1145, 79
      %v1156 = vpop.permute.xlu0 %1155
      %1157 = vrot.lane.b32.xlu0 %v1146, 79
      %v1158 = vpop.permute.xlu0 %1157
      %v1159 = vsel %vm712, %v1152, %v1154
      %v1160 = vsel %vm712, %v1154, %v1156
      %v1161 = vsel %vm712, %v1156, %v1158
      %1165 = vst [vmem:[#allocation2 + $0xa8] sm:$0xff] %v1159
      %1166 = vst [vmem:[#allocation2 + $0xb0] sm:$0xff] %v1160
      %1167 = vst [vmem:[#allocation2 + $0xb8] sm:$0xff] %v1161
      %v1168 = vld [vmem:[#allocation3] sm:$0xff]
      %v1169 = vld [vmem:[#allocation3 + $0x8] sm:$0xff]
      %v1170 = vld [vmem:[#allocation3 + $0x10] sm:$0xff]
      %v1171 = vld [vmem:[#allocation3 + $0x18] sm:$0xff]
      %1176 = vrot.lane.b32.xlu0 %v1168, 78
      %v1177 = vpop.permute.xlu0 %1176
      %1178 = vrot.lane.b32.xlu0 %v1169, 78
      %v1179 = vpop.permute.xlu0 %1178
      %1180 = vrot.lane.b32.xlu0 %v1170, 78
      %v1181 = vpop.permute.xlu0 %1180
      %1182 = vrot.lane.b32.xlu0 %v1171, 78
      %v1183 = vpop.permute.xlu0 %1182
      %v1184 = vsel %vm736, %v1177, %v1179
      %v1185 = vsel %vm736, %v1179, %v1181
      %v1186 = vsel %vm736, %v1181, %v1183
      %1190 = vst [vmem:[#allocation2 + $0xc0] sm:$0xff] %v1184
      %1191 = vst [vmem:[#allocation2 + $0xc8] sm:$0xff] %v1185
      %1192 = vst [vmem:[#allocation2 + $0xd0] sm:$0xff] %v1186
      %v1193 = vld [vmem:[#allocation2] sm:$0xff]
      %v1194 = vld [vmem:[#allocation2 + $0x8] sm:$0xff]
      %v1195 = vld [vmem:[#allocation2 + $0x10] sm:$0xff]
      %v1196 = vld [vmem:[#allocation2 + $0x18] sm:$0xff]
      %v1197 = vld [vmem:[#allocation2 + $0x20] sm:$0xff]
      %v1198 = vld [vmem:[#allocation2 + $0x28] sm:$0xff]
      %v1199 = vld [vmem:[#allocation2 + $0x30] sm:$0xff]
      %v1200 = vld [vmem:[#allocation2 + $0x38] sm:$0xff]
      %v1201 = vld [vmem:[#allocation2 + $0x40] sm:$0xff]
      %v1202 = vld [vmem:[#allocation2 + $0x48] sm:$0xff]
      %v1203 = vld [vmem:[#allocation2 + $0x50] sm:$0xff]
      %v1204 = vld [vmem:[#allocation2 + $0x58] sm:$0xff]
      %v1205 = vld [vmem:[#allocation2 + $0x60] sm:$0xff]
      %v1206 = vld [vmem:[#allocation2 + $0x68] sm:$0xff]
      %v1207 = vld [vmem:[#allocation2 + $0x70] sm:$0xff]
      %v1208 = vld [vmem:[#allocation2 + $0x78] sm:$0xff]
      %v1209 = vld [vmem:[#allocation2 + $0x80] sm:$0xff]
      %v1210 = vld [vmem:[#allocation2 + $0x88] sm:$0xff]
      %v1211 = vld [vmem:[#allocation2 + $0x90] sm:$0xff]
      %v1212 = vld [vmem:[#allocation2 + $0x98] sm:$0xff]
      %v1213 = vld [vmem:[#allocation2 + $0xa0] sm:$0xff]
      %v1214 = vld [vmem:[#allocation2 + $0xa8] sm:$0xff]
      %v1215 = vld [vmem:[#allocation2 + $0xb0] sm:$0xff]
      %v1216 = vld [vmem:[#allocation2 + $0xb8] sm:$0xff]
      %v1217 = vld [vmem:[#allocation2 + $0xc0] sm:$0xff]
      %v1218 = vld [vmem:[#allocation2 + $0xc8] sm:$0xff]
      %v1219 = vld [vmem:[#allocation2 + $0xd0] sm:$0xff]
      %v1220 = vld [vmem:[%s5] sm:$0xff]
      %v1221 = vld [vmem:[%s6] sm:$0xff]
      %1223 = vset.pattern.permute.xlu0 0
      %1224 = vperm.xlu0 %1223, %v1221
      %v1225 = vpop.permute.xlu0 %1224
      %v1228 = vsel %vm955, %v1220, 0
      %1230 = vmatprep.subr.mxu0 0.0
      %1231 = vmatpush1.msra.mxu0 0.0
      %1232 = vmatprep.subr.mxu0 0.0
      %1233 = vmatpush1.msra.mxu0 0.0
      %1234 = vmatprep.subr.mxu0 0.0
      %1235 = vmatpush1.msra.mxu0 0.0
      %1236 = vmatprep.subr.mxu0 0.0
      %1237 = vmatpush1.msra.mxu0 0.0
      %1238 = vmatprep.subr.mxu0 0.0
      %1239 = vmatpush1.msra.mxu0 0.0
      %1240 = vmatprep.subr.mxu0 0.0
      %1241 = vmatpush1.msra.mxu0 0.0
      %1242 = vmatprep.subr.mxu0 0.0
      %1243 = vmatpush1.msra.mxu0 0.0
      %1244 = vmatprep.subr.mxu0 %v1218
      %1245 = vmatpush1.msra.mxu0 %v1217
      %1246 = vmatprep.subr.mxu0 %v1215
      %1247 = vmatpush1.msra.mxu0 %v1214
      %1248 = vmatprep.subr.mxu0 %v1212
      %1249 = vmatpush1.msra.mxu0 %v1211
      %1250 = vmatprep.subr.mxu0 %v1209
      %1251 = vmatpush1.msra.mxu0 %v1208
      %1252 = vmatprep.subr.mxu0 %v1206
      %1253 = vmatpush1.msra.mxu0 %v1205
      %1254 = vmatprep.subr.mxu0 %v1203
      %1255 = vmatpush1.msra.mxu0 %v1202
      %1256 = vmatprep.subr.mxu0 %v1200
      %1257 = vmatpush1.msra.mxu0 %v1199
      %1258 = vmatprep.subr.mxu0 %v1197
      %1259 = vmatpush1.msra.mxu0 %v1196
      %1260 = vmatprep.subr.mxu0 %v1194
      %1261 = vmatpush1.msra.mxu0 %v1193
      %1262 = vmatprep.subr.mxu0 0.0
      %1263 = vmatpush2.msra.mxu0 0.0
      %1264 = vmatprep.subr.mxu0 0.0
      %1265 = vmatpush2.msra.mxu0 0.0
      %1266 = vmatprep.subr.mxu0 0.0
      %1267 = vmatpush2.msra.mxu0 0.0
      %1268 = vmatprep.subr.mxu0 0.0
      %1269 = vmatpush2.msra.mxu0 0.0
      %1270 = vmatprep.subr.mxu0 0.0
      %1271 = vmatpush2.msra.mxu0 0.0
      %1272 = vmatprep.subr.mxu0 0.0
      %1273 = vmatpush2.msra.mxu0 0.0
      %1274 = vmatprep.subr.mxu0 0.0
      %1275 = vmatpush2.msra.mxu0 0.0
      %1276 = vmatprep.subr.mxu0 0.0
      %1277 = vmatpush2.msra.mxu0 0.0
      %1278 = vmatprep.subr.mxu0 0.0
      %1279 = vmatpush2.msra.mxu0 0.0
      %1280 = vmatprep.subr.mxu0 0.0
      %1281 = vmatpush2.msra.mxu0 0.0
      %1282 = vmatprep.subr.mxu0 0.0
      %1283 = vmatpush2.msra.mxu0 0.0
      %1284 = vmatprep.subr.mxu0 0.0
      %1285 = vmatpush2.msra.mxu0 0.0
      %1286 = vmatprep.subr.mxu0 0.0
      %1287 = vmatpush2.msra.mxu0 0.0
      %1288 = vmatprep.subr.mxu0 0.0
      %1289 = vmatpush2.msra.mxu0 0.0
      %1290 = vmatprep.subr.mxu0 0.0
      %1291 = vmatpush2.msra.mxu0 0.0
      %1292 = vmatprep.subr.mxu0 0.0
      %1293 = vmatpush2.msra.mxu0 0.0
      %1294 = vmatprep.mubr.f32.mxu0 0.0
      %1295 = vmatmul.mubr.f32.gmra.mxu0 %v1228
      %v1296 = vpop.f32.mrf.mxu0
      %v1297 = vadd.f32 %v1225, %v1296
      %v1298 = vpop.f32.mrf.mxu0
      %v1299 = vadd.f32 %v1225, %v1298
      %1300 = vdwg.mxu0
      %1301 = vmatprep.subr.mxu0 0.0
      %1302 = vmatpush1.msra.mxu0 0.0
      %1303 = vmatprep.subr.mxu0 0.0
      %1304 = vmatpush1.msra.mxu0 0.0
      %1305 = vmatprep.subr.mxu0 0.0
      %1306 = vmatpush1.msra.mxu0 0.0
      %1307 = vmatprep.subr.mxu0 0.0
      %1308 = vmatpush1.msra.mxu0 0.0
      %1309 = vmatprep.subr.mxu0 0.0
      %1310 = vmatpush1.msra.mxu0 0.0
      %1311 = vmatprep.subr.mxu0 0.0
      %1312 = vmatpush1.msra.mxu0 0.0
      %1313 = vmatprep.subr.mxu0 0.0
      %1314 = vmatpush1.msra.mxu0 0.0
      %1315 = vmatprep.subr.mxu0 0.0
      %1316 = vmatpush1.msra.mxu0 %v1219
      %1317 = vmatprep.subr.mxu0 0.0
      %1318 = vmatpush1.msra.mxu0 %v1216
      %1319 = vmatprep.subr.mxu0 0.0
      %1320 = vmatpush1.msra.mxu0 %v1213
      %1321 = vmatprep.subr.mxu0 0.0
      %1322 = vmatpush1.msra.mxu0 %v1210
      %1323 = vmatprep.subr.mxu0 0.0
      %1324 = vmatpush1.msra.mxu0 %v1207
      %1325 = vmatprep.subr.mxu0 0.0
      %1326 = vmatpush1.msra.mxu0 %v1204
      %1327 = vmatprep.subr.mxu0 0.0
      %1328 = vmatpush1.msra.mxu0 %v1201
      %1329 = vmatprep.subr.mxu0 0.0
      %1330 = vmatpush1.msra.mxu0 %v1198
      %1331 = vmatprep.subr.mxu0 0.0
      %1332 = vmatpush1.msra.mxu0 %v1195
      %1333 = vmatprep.subr.mxu0 0.0
      %1334 = vmatpush2.msra.mxu0 0.0
      %1335 = vmatprep.subr.mxu0 0.0
      %1336 = vmatpush2.msra.mxu0 0.0
      %1337 = vmatprep.subr.mxu0 0.0
      %1338 = vmatpush2.msra.mxu0 0.0
      %1339 = vmatprep.subr.mxu0 0.0
      %1340 = vmatpush2.msra.mxu0 0.0
      %1341 = vmatprep.subr.mxu0 0.0
      %1342 = vmatpush2.msra.mxu0 0.0
      %1343 = vmatprep.subr.mxu0 0.0
      %1344 = vmatpush2.msra.mxu0 0.0
      %1345 = vmatprep.subr.mxu0 0.0
      %1346 = vmatpush2.msra.mxu0 0.0
      %1347 = vmatprep.subr.mxu0 0.0
      %1348 = vmatpush2.msra.mxu0 0.0
      %1349 = vmatprep.subr.mxu0 0.0
      %1350 = vmatpush2.msra.mxu0 0.0
      %1351 = vmatprep.subr.mxu0 0.0
      %1352 = vmatpush2.msra.mxu0 0.0
      %1353 = vmatprep.subr.mxu0 0.0
      %1354 = vmatpush2.msra.mxu0 0.0
      %1355 = vmatprep.subr.mxu0 0.0
      %1356 = vmatpush2.msra.mxu0 0.0
      %1357 = vmatprep.subr.mxu0 0.0
      %1358 = vmatpush2.msra.mxu0 0.0
      %1359 = vmatprep.subr.mxu0 0.0
      %1360 = vmatpush2.msra.mxu0 0.0
      %1361 = vmatprep.subr.mxu0 0.0
      %1362 = vmatpush2.msra.mxu0 0.0
      %1363 = vmatprep.subr.mxu0 0.0
      %1364 = vmatpush2.msra.mxu0 0.0
      %1365 = vmatprep.mubr.f32.mxu0 0.0
      %1366 = vmatmul.mubr.f32.gmra.mxu0 %v1228
      %v1367 = vpop.f32.mrf.mxu0
      %v1368 = vadd.f32 %v1225, %v1367
      %v1369 = vpop.f32.mrf.mxu0
      %1370 = vdwg.mxu0
      %v1371 = vmax.f32 %v1297, 0.0
      %v1372 = vmax.f32 %v1299, 0.0
      %v1373 = vmax.f32 %v1368, 0.0
      %1374 = vst [vmem:[%s484] sm:$0xff] %v1371
      %1375 = vst [vmem:[%s484 + $0x8] sm:$0xff] %v1372
      %1376 = vst [vmem:[%s484 + $0x10] sm:$0xff] %v1373
      %1377 = vst [vmem:[#allocation4] sm:$0xff] 0.0
      %1378 = vst [vmem:[#allocation4 + $0x8] sm:$0xff] 0.0
      %1379 = vst [vmem:[#allocation4 + $0x10] sm:$0xff] 0.0
      %1380 = vst.msk [vmem:[#allocation4 + $0x18] sm:$0xff] %vm955, 0.0
      %v1381 = vsel %vm960, %v1371, 0.0
      %v1382 = vsel %vm961, %v1372, 0.0
      %v1383 = vsel %vm962, %v1373, 0.0
      %1387 = vrot.lane.b32.xlu0 %v1381, 25
      %v1388 = vpop.permute.xlu0 %1387
      %1389 = vrot.lane.b32.xlu0 %v1382, 25
      %v1390 = vpop.permute.xlu0 %1389
      %1391 = vrot.lane.b32.xlu0 %v1383, 25
      %v1392 = vpop.permute.xlu0 %1391
      %v1393 = vsel %vm975, %v1388, %v1390
      %v1394 = vsel %vm975, %v1390, %v1392
      %1399 = vst.msk [vmem:[#allocation4] sm:$0xff] %vm982, %v1388
      %1400 = vst [vmem:[#allocation4 + $0x8] sm:$0xff] %v1393
      %1401 = vst [vmem:[#allocation4 + $0x10] sm:$0xff] %v1394
      %1402 = vst.msk [vmem:[#allocation4 + $0x18] sm:$0xff] %vm975, %v1392
      %v1403 = vld [vmem:[#allocation4] sm:$0xff]
      %v1404 = vld [vmem:[#allocation4 + $0x8] sm:$0xff]
      %v1405 = vld [vmem:[#allocation4 + $0x10] sm:$0xff]
      %1406 = vst [vmem:[#allocation2] sm:$0xff] %v1403
      %1407 = vst [vmem:[#allocation2 + $0x8] sm:$0xff] %v1404
      %1408 = vst [vmem:[#allocation2 + $0x10] sm:$0xff] %v1405
      %v1409 = vld [vmem:[#allocation4] sm:$0xff]
      %v1410 = vld [vmem:[#allocation4 + $0x8] sm:$0xff]
      %v1411 = vld [vmem:[#allocation4 + $0x10] sm:$0xff]
      %v1412 = vld [vmem:[#allocation4 + $0x18] sm:$0xff]
      %1417 = vrot.lane.b32.xlu0 %v1409, 127
      %v1418 = vpop.permute.xlu0 %1417
      %1419 = vrot.lane.b32.xlu0 %v1410, 127
      %v1420 = vpop.permute.xlu0 %1419
      %1421 = vrot.lane.b32.xlu0 %v1411, 127
      %v1422 = vpop.permute.xlu0 %1421
      %1423 = vrot.lane.b32.xlu0 %v1412, 127
      %v1424 = vpop.permute.xlu0 %1423
      %v1425 = vsel %vm568, %v1418, %v1420
      %v1426 = vsel %vm568, %v1420, %v1422
      %v1427 = vsel %vm568, %v1422, %v1424
      %1431 = vst [vmem:[#allocation2 + $0x18] sm:$0xff] %v1425
      %1432 = vst [vmem:[#allocation2 + $0x20] sm:$0xff] %v1426
      %1433 = vst [vmem:[#allocation2 + $0x28] sm:$0xff] %v1427
      %v1434 = vld [vmem:[#allocation4] sm:$0xff]
      %v1435 = vld [vmem:[#allocation4 + $0x8] sm:$0xff]
      %v1436 = vld [vmem:[#allocation4 + $0x10] sm:$0xff]
      %v1437 = vld [vmem:[#allocation4 + $0x18] sm:$0xff]
      %1442 = vrot.lane.b32.xlu0 %v1434, 126
      %v1443 = vpop.permute.xlu0 %1442
      %1444 = vrot.lane.b32.xlu0 %v1435, 126
      %v1445 = vpop.permute.xlu0 %1444
      %1446 = vrot.lane.b32.xlu0 %v1436, 126
      %v1447 = vpop.permute.xlu0 %1446
      %1448 = vrot.lane.b32.xlu0 %v1437, 126
      %v1449 = vpop.permute.xlu0 %1448
      %v1450 = vsel %vm592, %v1443, %v1445
      %v1451 = vsel %vm592, %v1445, %v1447
      %v1452 = vsel %vm592, %v1447, %v1449
      %1456 = vst [vmem:[#allocation2 + $0x30] sm:$0xff] %v1450
      %1457 = vst [vmem:[#allocation2 + $0x38] sm:$0xff] %v1451
      %1458 = vst [vmem:[#allocation2 + $0x40] sm:$0xff] %v1452
      %v1459 = vld [vmem:[#allocation4] sm:$0xff]
      %v1460 = vld [vmem:[#allocation4 + $0x8] sm:$0xff]
      %v1461 = vld [vmem:[#allocation4 + $0x10] sm:$0xff]
      %v1462 = vld [vmem:[#allocation4 + $0x18] sm:$0xff]
      %1467 = vrot.lane.b32.xlu0 %v1459, 104
      %v1468 = vpop.permute.xlu0 %1467
      %1469 = vrot.lane.b32.xlu0 %v1460, 104
      %v1470 = vpop.permute.xlu0 %1469
      %1471 = vrot.lane.b32.xlu0 %v1461, 104
      %v1472 = vpop.permute.xlu0 %1471
      %1473 = vrot.lane.b32.xlu0 %v1462, 104
      %v1474 = vpop.permute.xlu0 %1473
      %v1475 = vsel %vm616, %v1468, %v1470
      %v1476 = vsel %vm616, %v1470, %v1472
      %v1477 = vsel %vm616, %v1472, %v1474
      %1481 = vst [vmem:[#allocation2 + $0x48] sm:$0xff] %v1475
      %1482 = vst [vmem:[#allocation2 + $0x50] sm:$0xff] %v1476
      %1483 = vst [vmem:[#allocation2 + $0x58] sm:$0xff] %v1477
      %v1484 = vld [vmem:[#allocation4] sm:$0xff]
      %v1485 = vld [vmem:[#allocation4 + $0x8] sm:$0xff]
      %v1486 = vld [vmem:[#allocation4 + $0x10] sm:$0xff]
      %v1487 = vld [vmem:[#allocation4 + $0x18] sm:$0xff]
      %1492 = vrot.lane.b32.xlu0 %v1484, 103
      %v1493 = vpop.permute.xlu0 %1492
      %1494 = vrot.lane.b32.xlu0 %v1485, 103
      %v1495 = vpop.permute.xlu0 %1494
      %1496 = vrot.lane.b32.xlu0 %v1486, 103
      %v1497 = vpop.permute.xlu0 %1496
      %1498 = vrot.lane.b32.xlu0 %v1487, 103
      %v1499 = vpop.permute.xlu0 %1498
      %v1500 = vsel %vm640, %v1493, %v1495
      %v1501 = vsel %vm640, %v1495, %v1497
      %v1502 = vsel %vm640, %v1497, %v1499
      %1506 = vst [vmem:[#allocation2 + $0x60] sm:$0xff] %v1500
      %1507 = vst [vmem:[#allocation2 + $0x68] sm:$0xff] %v1501
      %1508 = vst [vmem:[#allocation2 + $0x70] sm:$0xff] %v1502
      %v1509 = vld [vmem:[#allocation4] sm:$0xff]
      %v1510 = vld [vmem:[#allocation4 + $0x8] sm:$0xff]
      %v1511 = vld [vmem:[#allocation4 + $0x10] sm:$0xff]
      %v1512 = vld [vmem:[#allocation4 + $0x18] sm:$0xff]
      %1517 = vrot.lane.b32.xlu0 %v1509, 102
      %v1518 = vpop.permute.xlu0 %1517
      %1519 = vrot.lane.b32.xlu0 %v1510, 102
      %v1520 = vpop.permute.xlu0 %1519
      %1521 = vrot.lane.b32.xlu0 %v1511, 102
      %v1522 = vpop.permute.xlu0 %1521
      %1523 = vrot.lane.b32.xlu0 %v1512, 102
      %v1524 = vpop.permute.xlu0 %1523
      %v1525 = vsel %vm664, %v1518, %v1520
      %v1526 = vsel %vm664, %v1520, %v1522
      %v1527 = vsel %vm664, %v1522, %v1524
      %1531 = vst [vmem:[#allocation2 + $0x78] sm:$0xff] %v1525
      %1532 = vst [vmem:[#allocation2 + $0x80] sm:$0xff] %v1526
      %1533 = vst [vmem:[#allocation2 + $0x88] sm:$0xff] %v1527
      %v1534 = vld [vmem:[#allocation4] sm:$0xff]
      %v1535 = vld [vmem:[#allocation4 + $0x8] sm:$0xff]
      %v1536 = vld [vmem:[#allocation4 + $0x10] sm:$0xff]
      %v1537 = vld [vmem:[#allocation4 + $0x18] sm:$0xff]
      %1542 = vrot.lane.b32.xlu0 %v1534, 80
      %v1543 = vpop.permute.xlu0 %1542
      %1544 = vrot.lane.b32.xlu0 %v1535, 80
      %v1545 = vpop.permute.xlu0 %1544
      %1546 = vrot.lane.b32.xlu0 %v1536, 80
      %v1547 = vpop.permute.xlu0 %1546
      %1548 = vrot.lane.b32.xlu0 %v1537, 80
      %v1549 = vpop.permute.xlu0 %1548
      %v1550 = vsel %vm688, %v1543, %v1545
      %v1551 = vsel %vm688, %v1545, %v1547
      %v1552 = vsel %vm688, %v1547, %v1549
      %1556 = vst [vmem:[#allocation2 + $0x90] sm:$0xff] %v1550
      %1557 = vst [vmem:[#allocation2 + $0x98] sm:$0xff] %v1551
      %1558 = vst [vmem:[#allocation2 + $0xa0] sm:$0xff] %v1552
      %v1559 = vld [vmem:[#allocation4] sm:$0xff]
      %v1560 = vld [vmem:[#allocation4 + $0x8] sm:$0xff]
      %v1561 = vld [vmem:[#allocation4 + $0x10] sm:$0xff]
      %v1562 = vld [vmem:[#allocation4 + $0x18] sm:$0xff]
      %1567 = vrot.lane.b32.xlu0 %v1559, 79
      %v1568 = vpop.permute.xlu0 %1567
      %1569 = vrot.lane.b32.xlu0 %v1560, 79
      %v1570 = vpop.permute.xlu0 %1569
      %1571 = vrot.lane.b32.xlu0 %v1561, 79
      %v1572 = vpop.permute.xlu0 %1571
      %1573 = vrot.lane.b32.xlu0 %v1562, 79
      %v1574 = vpop.permute.xlu0 %1573
      %v1575 = vsel %vm712, %v1568, %v1570
      %v1576 = vsel %vm712, %v1570, %v1572
      %v1577 = vsel %vm712, %v1572, %v1574
      %1581 = vst [vmem:[#allocation2 + $0xa8] sm:$0xff] %v1575
      %1582 = vst [vmem:[#allocation2 + $0xb0] sm:$0xff] %v1576
      %1583 = vst [vmem:[#allocation2 + $0xb8] sm:$0xff] %v1577
      %v1584 = vld [vmem:[#allocation4] sm:$0xff]
      %v1585 = vld [vmem:[#allocation4 + $0x8] sm:$0xff]
      %v1586 = vld [vmem:[#allocation4 + $0x10] sm:$0xff]
      %v1587 = vld [vmem:[#allocation4 + $0x18] sm:$0xff]
      %1592 = vrot.lane.b32.xlu0 %v1584, 78
      %v1593 = vpop.permute.xlu0 %1592
      %1594 = vrot.lane.b32.xlu0 %v1585, 78
      %v1595 = vpop.permute.xlu0 %1594
      %1596 = vrot.lane.b32.xlu0 %v1586, 78
      %v1597 = vpop.permute.xlu0 %1596
      %1598 = vrot.lane.b32.xlu0 %v1587, 78
      %v1599 = vpop.permute.xlu0 %1598
      %v1600 = vsel %vm736, %v1593, %v1595
      %v1601 = vsel %vm736, %v1595, %v1597
      %v1602 = vsel %vm736, %v1597, %v1599
      %1606 = vst [vmem:[#allocation2 + $0xc0] sm:$0xff] %v1600
      %1607 = vst [vmem:[#allocation2 + $0xc8] sm:$0xff] %v1601
      %1608 = vst [vmem:[#allocation2 + $0xd0] sm:$0xff] %v1602
      %v1609 = vld [vmem:[#allocation2] sm:$0xff]
      %v1610 = vld [vmem:[#allocation2 + $0x8] sm:$0xff]
      %v1611 = vld [vmem:[#allocation2 + $0x10] sm:$0xff]
      %v1612 = vld [vmem:[#allocation2 + $0x18] sm:$0xff]
      %v1613 = vld [vmem:[#allocation2 + $0x20] sm:$0xff]
      %v1614 = vld [vmem:[#allocation2 + $0x28] sm:$0xff]
      %v1615 = vld [vmem:[#allocation2 + $0x30] sm:$0xff]
      %v1616 = vld [vmem:[#allocation2 + $0x38] sm:$0xff]
      %v1617 = vld [vmem:[#allocation2 + $0x40] sm:$0xff]
      %v1618 = vld [vmem:[#allocation2 + $0x48] sm:$0xff]
      %v1619 = vld [vmem:[#allocation2 + $0x50] sm:$0xff]
      %v1620 = vld [vmem:[#allocation2 + $0x58] sm:$0xff]
      %v1621 = vld [vmem:[#allocation2 + $0x60] sm:$0xff]
      %v1622 = vld [vmem:[#allocation2 + $0x68] sm:$0xff]
      %v1623 = vld [vmem:[#allocation2 + $0x70] sm:$0xff]
      %v1624 = vld [vmem:[#allocation2 + $0x78] sm:$0xff]
      %v1625 = vld [vmem:[#allocation2 + $0x80] sm:$0xff]
      %v1626 = vld [vmem:[#allocation2 + $0x88] sm:$0xff]
      %v1627 = vld [vmem:[#allocation2 + $0x90] sm:$0xff]
      %v1628 = vld [vmem:[#allocation2 + $0x98] sm:$0xff]
      %v1629 = vld [vmem:[#allocation2 + $0xa0] sm:$0xff]
      %v1630 = vld [vmem:[#allocation2 + $0xa8] sm:$0xff]
      %v1631 = vld [vmem:[#allocation2 + $0xb0] sm:$0xff]
      %v1632 = vld [vmem:[#allocation2 + $0xb8] sm:$0xff]
      %v1633 = vld [vmem:[#allocation2 + $0xc0] sm:$0xff]
      %v1634 = vld [vmem:[#allocation2 + $0xc8] sm:$0xff]
      %v1635 = vld [vmem:[#allocation2 + $0xd0] sm:$0xff]
      %v1636 = vld [vmem:[%s7] sm:$0xff]
      %v1637 = vld [vmem:[%s7 + $0x8] sm:$0xff]
      %v1638 = vld [vmem:[%s8] sm:$0xff]
      %v1639 = vld [vmem:[%s8 + $0x8] sm:$0xff]
      %1641 = vset.pattern.permute.xlu0 0
      %1642 = vperm.xlu0 %1641, %v1638
      %v1643 = vpop.permute.xlu0 %1642
      %1646 = vset.pattern.permute.xlu0 0
      %1647 = vperm.xlu0 %1646, %v1639
      %v1648 = vpop.permute.xlu0 %1647
      %v1651 = vsel %vm955, %v1636, 0
      %v1654 = vsel %vm955, %v1637, 0
      %1656 = vmatprep.subr.mxu0 0.0
      %1657 = vmatpush1.msra.mxu0 0.0
      %1658 = vmatprep.subr.mxu0 0.0
      %1659 = vmatpush1.msra.mxu0 0.0
      %1660 = vmatprep.subr.mxu0 0.0
      %1661 = vmatpush1.msra.mxu0 0.0
      %1662 = vmatprep.subr.mxu0 0.0
      %1663 = vmatpush1.msra.mxu0 0.0
      %1664 = vmatprep.subr.mxu0 0.0
      %1665 = vmatpush1.msra.mxu0 0.0
      %1666 = vmatprep.subr.mxu0 0.0
      %1667 = vmatpush1.msra.mxu0 0.0
      %1668 = vmatprep.subr.mxu0 0.0
      %1669 = vmatpush1.msra.mxu0 0.0
      %1670 = vmatprep.subr.mxu0 %v1634
      %1671 = vmatpush1.msra.mxu0 %v1633
      %1672 = vmatprep.subr.mxu0 %v1631
      %1673 = vmatpush1.msra.mxu0 %v1630
      %1674 = vmatprep.subr.mxu0 %v1628
      %1675 = vmatpush1.msra.mxu0 %v1627
      %1676 = vmatprep.subr.mxu0 %v1625
      %1677 = vmatpush1.msra.mxu0 %v1624
      %1678 = vmatprep.subr.mxu0 %v1622
      %1679 = vmatpush1.msra.mxu0 %v1621
      %1680 = vmatprep.subr.mxu0 %v1619
      %1681 = vmatpush1.msra.mxu0 %v1618
      %1682 = vmatprep.subr.mxu0 %v1616
      %1683 = vmatpush1.msra.mxu0 %v1615
      %1684 = vmatprep.subr.mxu0 %v1613
      %1685 = vmatpush1.msra.mxu0 %v1612
      %1686 = vmatprep.subr.mxu0 %v1610
      %1687 = vmatpush1.msra.mxu0 %v1609
      %1688 = vmatprep.subr.mxu0 0.0
      %1689 = vmatpush2.msra.mxu0 0.0
      %1690 = vmatprep.subr.mxu0 0.0
      %1691 = vmatpush2.msra.mxu0 0.0
      %1692 = vmatprep.subr.mxu0 0.0
      %1693 = vmatpush2.msra.mxu0 0.0
      %1694 = vmatprep.subr.mxu0 0.0
      %1695 = vmatpush2.msra.mxu0 0.0
      %1696 = vmatprep.subr.mxu0 0.0
      %1697 = vmatpush2.msra.mxu0 0.0
      %1698 = vmatprep.subr.mxu0 0.0
      %1699 = vmatpush2.msra.mxu0 0.0
      %1700 = vmatprep.subr.mxu0 0.0
      %1701 = vmatpush2.msra.mxu0 0.0
      %1702 = vmatprep.subr.mxu0 0.0
      %1703 = vmatpush2.msra.mxu0 0.0
      %1704 = vmatprep.subr.mxu0 0.0
      %1705 = vmatpush2.msra.mxu0 0.0
      %1706 = vmatprep.subr.mxu0 0.0
      %1707 = vmatpush2.msra.mxu0 0.0
      %1708 = vmatprep.subr.mxu0 0.0
      %1709 = vmatpush2.msra.mxu0 0.0
      %1710 = vmatprep.subr.mxu0 0.0
      %1711 = vmatpush2.msra.mxu0 0.0
      %1712 = vmatprep.subr.mxu0 0.0
      %1713 = vmatpush2.msra.mxu0 0.0
      %1714 = vmatprep.subr.mxu0 0.0
      %1715 = vmatpush2.msra.mxu0 0.0
      %1716 = vmatprep.subr.mxu0 0.0
      %1717 = vmatpush2.msra.mxu0 0.0
      %1718 = vmatprep.subr.mxu0 0.0
      %1719 = vmatpush2.msra.mxu0 0.0
      %1720 = vmatprep.mubr.f32.mxu0 0.0
      %1721 = vmatmul.mubr.f32.gmra.mxu0 %v1651
      %v1722 = vpop.f32.mrf.mxu0
      %v1723 = vadd.f32 %v1643, %v1722
      %v1724 = vpop.f32.mrf.mxu0
      %v1725 = vadd.f32 %v1643, %v1724
      %1726 = vmatprep.mubr.f32.mxu0 0.0
      %1727 = vmatmul.mubr.f32.gmra.mxu0 %v1654
      %v1728 = vpop.f32.mrf.mxu0
      %v1729 = vadd.f32 %v1648, %v1728
      %v1730 = vpop.f32.mrf.mxu0
      %v1731 = vadd.f32 %v1648, %v1730
      %1732 = vdwg.mxu0
      %1733 = vmatprep.subr.mxu0 0.0
      %1734 = vmatpush1.msra.mxu0 0.0
      %1735 = vmatprep.subr.mxu0 0.0
      %1736 = vmatpush1.msra.mxu0 0.0
      %1737 = vmatprep.subr.mxu0 0.0
      %1738 = vmatpush1.msra.mxu0 0.0
      %1739 = vmatprep.subr.mxu0 0.0
      %1740 = vmatpush1.msra.mxu0 0.0
      %1741 = vmatprep.subr.mxu0 0.0
      %1742 = vmatpush1.msra.mxu0 0.0
      %1743 = vmatprep.subr.mxu0 0.0
      %1744 = vmatpush1.msra.mxu0 0.0
      %1745 = vmatprep.subr.mxu0 0.0
      %1746 = vmatpush1.msra.mxu0 0.0
      %1747 = vmatprep.subr.mxu0 0.0
      %1748 = vmatpush1.msra.mxu0 %v1635
      %1749 = vmatprep.subr.mxu0 0.0
      %1750 = vmatpush1.msra.mxu0 %v1632
      %1751 = vmatprep.subr.mxu0 0.0
      %1752 = vmatpush1.msra.mxu0 %v1629
      %1753 = vmatprep.subr.mxu0 0.0
      %1754 = vmatpush1.msra.mxu0 %v1626
      %1755 = vmatprep.subr.mxu0 0.0
      %1756 = vmatpush1.msra.mxu0 %v1623
      %1757 = vmatprep.subr.mxu0 0.0
      %1758 = vmatpush1.msra.mxu0 %v1620
      %1759 = vmatprep.subr.mxu0 0.0
      %1760 = vmatpush1.msra.mxu0 %v1617
      %1761 = vmatprep.subr.mxu0 0.0
      %1762 = vmatpush1.msra.mxu0 %v1614
      %1763 = vmatprep.subr.mxu0 0.0
      %1764 = vmatpush1.msra.mxu0 %v1611
      %1765 = vmatprep.subr.mxu0 0.0
      %1766 = vmatpush2.msra.mxu0 0.0
      %1767 = vmatprep.subr.mxu0 0.0
      %1768 = vmatpush2.msra.mxu0 0.0
      %1769 = vmatprep.subr.mxu0 0.0
      %1770 = vmatpush2.msra.mxu0 0.0
      %1771 = vmatprep.subr.mxu0 0.0
      %1772 = vmatpush2.msra.mxu0 0.0
      %1773 = vmatprep.subr.mxu0 0.0
      %1774 = vmatpush2.msra.mxu0 0.0
      %1775 = vmatprep.subr.mxu0 0.0
      %1776 = vmatpush2.msra.mxu0 0.0
      %1777 = vmatprep.subr.mxu0 0.0
      %1778 = vmatpush2.msra.mxu0 0.0
      %1779 = vmatprep.subr.mxu0 0.0
      %1780 = vmatpush2.msra.mxu0 0.0
      %1781 = vmatprep.subr.mxu0 0.0
      %1782 = vmatpush2.msra.mxu0 0.0
      %1783 = vmatprep.subr.mxu0 0.0
      %1784 = vmatpush2.msra.mxu0 0.0
      %1785 = vmatprep.subr.mxu0 0.0
      %1786 = vmatpush2.msra.mxu0 0.0
      %1787 = vmatprep.subr.mxu0 0.0
      %1788 = vmatpush2.msra.mxu0 0.0
      %1789 = vmatprep.subr.mxu0 0.0
      %1790 = vmatpush2.msra.mxu0 0.0
      %1791 = vmatprep.subr.mxu0 0.0
      %1792 = vmatpush2.msra.mxu0 0.0
      %1793 = vmatprep.subr.mxu0 0.0
      %1794 = vmatpush2.msra.mxu0 0.0
      %1795 = vmatprep.subr.mxu0 0.0
      %1796 = vmatpush2.msra.mxu0 0.0
      %1797 = vmatprep.mubr.f32.mxu0 0.0
      %1798 = vmatmul.mubr.f32.gmra.mxu0 %v1651
      %v1799 = vpop.f32.mrf.mxu0
      %v1800 = vadd.f32 %v1643, %v1799
      %v1801 = vpop.f32.mrf.mxu0
      %1802 = vmatprep.mubr.f32.mxu0 0.0
      %1803 = vmatmul.mubr.f32.gmra.mxu0 %v1654
      %v1804 = vpop.f32.mrf.mxu0
      %v1805 = vadd.f32 %v1648, %v1804
      %v1806 = vpop.f32.mrf.mxu0
      %1807 = vdwg.mxu0
      %v1808 = vmax.f32 %v1723, 0.0
      %v1809 = vmax.f32 %v1725, 0.0
      %v1810 = vmax.f32 %v1800, 0.0
      %v1811 = vmax.f32 %v1729, 0.0
      %v1812 = vmax.f32 %v1731, 0.0
      %v1813 = vmax.f32 %v1805, 0.0
      %1814 = vst [vmem:[%s489] sm:$0xff] %v1808
      %1815 = vst [vmem:[%s489 + $0x8] sm:$0xff] %v1809
      %1816 = vst [vmem:[%s489 + $0x10] sm:$0xff] %v1810
      %1817 = vst [vmem:[%s489 + $0x18] sm:$0xff] %v1811
      %1818 = vst [vmem:[%s489 + $0x20] sm:$0xff] %v1812
      %1819 = vst [vmem:[%s489 + $0x28] sm:$0xff] %v1813
      %p1820 = scmp.lt.s32.totalorder %s25, 1
      %s1821 = scalar_select %p1820, %s25, 1
      %s1822 = smul.addr %s1821, 3
      %s1823 = smul.addr %s1822, 8
      %s1824 = scalar_lea.vmem %s9, %s1823
      %p1825 = scmp.lt.s32.totalorder %s25, 1
      %s1826 = scalar_select %p1825, %s25, 1
      %s1827 = smul.addr %s1826, 3
      %s1828 = smul.addr %s1827, 8
      %s1829 = scalar_lea.vmem %s10, %s1828
      %p1830 = scmp.lt.s32.totalorder %s25, 1
      %s1831 = scalar_select %p1830, %s25, 1
      %s1832 = smul.addr %s1831, 3
      %s1833 = smul.addr %s1832, 8
      %s1834 = scalar_lea.vmem %s11, %s1833
      %p1835 = scmp.lt.s32.totalorder %s25, 1
      %s1836 = scalar_select %p1835, %s25, 1
      %s1837 = smul.addr %s1836, 3
      %s1838 = smul.addr %s1837, 8
      %s1839 = scalar_lea.vmem %s12, %s1838
      %p1840 = scmp.lt.s32.totalorder %s25, 1
      %s1841 = scalar_select %p1840, %s25, 1
      %s1842 = smul.addr %s1841, 6
      %s1843 = smul.addr %s1842, 8
      %s1844 = scalar_lea.vmem %s13, %s1843
      // Predicated region
      $region57: #{encoder_forward.1} parent=55 // pred_check
        %p1845 = pneg %p237
      $region58: #{encoder_forward.1} parent=55 // pred_check_branch
        %1847 = sbr.rel (%p1845) target = $region60
      $region59: #{encoder_forward.1} parent=55 // pred_region
        _
      $region60: #{encoder_forward.1} parent=55 // pred_fallthru
        _
      // Predicated region
      $region61: #{encoder_forward.1} parent=55 // pred_check
        %p1848 = pneg %p263
      $region62: #{encoder_forward.1} parent=55 // pred_check_branch
        %1850 = sbr.rel (%p1848) target = $region64
      $region63: #{encoder_forward.1} parent=55 // pred_region
        _
      $region64: #{encoder_forward.1} parent=55 // pred_fallthru
        _
      // Predicated region
      $region65: #{encoder_forward.1} parent=55 // pred_check
        %p1851 = pneg %p289
      $region66: #{encoder_forward.1} parent=55 // pred_check_branch
        %1853 = sbr.rel (%p1851) target = $region68
      $region67: #{encoder_forward.1} parent=55 // pred_region
        _
      $region68: #{encoder_forward.1} parent=55 // pred_fallthru
        _
      // Predicated region
      $region69: #{encoder_forward.1} parent=55 // pred_check
        %p1854 = pneg %p315
      $region70: #{encoder_forward.1} parent=55 // pred_check_branch
        %1856 = sbr.rel (%p1854) target = $region72
      $region71: #{encoder_forward.1} parent=55 // pred_region
        _
      $region72: #{encoder_forward.1} parent=55 // pred_fallthru
        _
      // Predicated region
      $region73: #{encoder_forward.1} parent=55 // pred_check
        %p1857 = pneg %p341
      $region74: #{encoder_forward.1} parent=55 // pred_check_branch
        %1859 = sbr.rel (%p1857) target = $region76
      $region75: #{encoder_forward.1} parent=55 // pred_region
        _
      $region76: #{encoder_forward.1} parent=55 // pred_fallthru
        _
    $region56: #{encoder_forward.1} parent=5 // pred_fallthru
      _
    %p1860 = scmp.le.s32.totalorder 2, %s20
    // Predicated region
    $region77: #{encoder_forward.1} parent=5 // pred_check
      %p1861 = pneg %p1860
    $region78: #{encoder_forward.1} parent=5 // pred_check_branch
      %1863 = sbr.rel (%p1861) target = $region80
    $region79: #{encoder_forward.1} parent=5 // pred_region
      %s1864 = ssub.s32 %s20, 2
      // Predicated region
      $region81: #{encoder_forward.1} parent=79 // pred_check
        %p1865 = pneg %p243
      $region82: #{encoder_forward.1} parent=79 // pred_check_branch
        %1867 = sbr.rel (%p1865) target = $region84
      $region83: #{encoder_forward.1} parent=79 // pred_region
        %p1868 = scmp.lt.s32.totalorder %s26, 1
        %s1869 = scalar_select %p1868, %s26, 1
        %s1870 = smul.addr %s1869, 3
        %s1871 = smul.addr %s1870, 8
        %s1872 = scalar_lea.vmem %s9, %s1871
      $region84: #{encoder_forward.1} parent=79 // pred_fallthru
        _
      // Predicated region
      $region85: #{encoder_forward.1} parent=79 // pred_check
        %p1873 = pneg %p269
      $region86: #{encoder_forward.1} parent=79 // pred_check_branch
        %1875 = sbr.rel (%p1873) target = $region88
      $region87: #{encoder_forward.1} parent=79 // pred_region
        %p1876 = scmp.lt.s32.totalorder %s26, 1
        %s1877 = scalar_select %p1876, %s26, 1
        %s1878 = smul.addr %s1877, 3
        %s1879 = smul.addr %s1878, 8
        %s1880 = scalar_lea.vmem %s10, %s1879
      $region88: #{encoder_forward.1} parent=79 // pred_fallthru
        _
      // Predicated region
      $region89: #{encoder_forward.1} parent=79 // pred_check
        %p1881 = pneg %p295
      $region90: #{encoder_forward.1} parent=79 // pred_check_branch
        %1883 = sbr.rel (%p1881) target = $region92
      $region91: #{encoder_forward.1} parent=79 // pred_region
        %p1884 = scmp.lt.s32.totalorder %s26, 1
        %s1885 = scalar_select %p1884, %s26, 1
        %s1886 = smul.addr %s1885, 3
        %s1887 = smul.addr %s1886, 8
        %s1888 = scalar_lea.vmem %s11, %s1887
      $region92: #{encoder_forward.1} parent=79 // pred_fallthru
        _
      // Predicated region
      $region93: #{encoder_forward.1} parent=79 // pred_check
        %p1889 = pneg %p321
      $region94: #{encoder_forward.1} parent=79 // pred_check_branch
        %1891 = sbr.rel (%p1889) target = $region96
      $region95: #{encoder_forward.1} parent=79 // pred_region
        %p1892 = scmp.lt.s32.totalorder %s26, 1
        %s1893 = scalar_select %p1892, %s26, 1
        %s1894 = smul.addr %s1893, 3
        %s1895 = smul.addr %s1894, 8
        %s1896 = scalar_lea.vmem %s12, %s1895
      $region96: #{encoder_forward.1} parent=79 // pred_fallthru
        _
      // Predicated region
      $region97: #{encoder_forward.1} parent=79 // pred_check
        %p1897 = pneg %p347
      $region98: #{encoder_forward.1} parent=79 // pred_check_branch
        %1899 = sbr.rel (%p1897) target = $region100
      $region99: #{encoder_forward.1} parent=79 // pred_region
        %p1900 = scmp.lt.s32.totalorder %s26, 1
        %s1901 = scalar_select %p1900, %s26, 1
        %s1902 = smul.addr %s1901, 6
        %s1903 = smul.addr %s1902, 8
        %s1904 = scalar_lea.vmem %s13, %s1903
      $region100: #{encoder_forward.1} parent=79 // pred_fallthru
        _
    $region80: #{encoder_forward.1} parent=5 // pred_fallthru
      _
  $region6: #{encoder_forward.1} parent=0 // loop_footer
    %s24 = sadd.s32 1, %s20
  $region7: #{encoder_forward.1} parent=0 // loop_footer_branch
    %19 = sbr.rel target = $region3
  $region8: #{encoder_forward.1} parent=0 // loop_exit
    _

</llo_original>
